<compile_context>
chip_gen: v5e
topology: v5e:2x2
jax: 0.10.0
libtpu: 0.0.40
codegen_flags: <defaults>
</compile_context>

<pallas_src>
import math
import jax
import jax.numpy as jnp
from jax.experimental import pallas as pl
from jax.experimental.pallas import tpu as pltpu

# ---------------- model config (small, synthetic) ----------------
DIM       = 32
NUM_HEADS = 8
HEAD_DIM  = DIM // NUM_HEADS
SCALE     = HEAD_DIM ** (-0.5)
PHI       = (1.0 + 5.0 ** 0.5) / 2.0

BATCH = 2
SEQ   = 8


def fractal_attention_kernel(x_ref, wqkv_ref, bqkv_ref, wo_ref, bo_ref, o_ref,
                             out_scratch):
    """Single gridless invocation; the whole (tiny) problem lives in VMEM.

    Refs:
      x_ref       : (B*S, D)   flattened input
      wqkv_ref    : (D, 3D)    packed [Wq^T * SCALE | Wk^T | Wv^T]
      bqkv_ref    : (1, 3D)    packed [bq * SCALE | bk | bv]
      wo_ref      : (D, D)     Wo^T with phi^(-h) folded into head-h rows
      bo_ref      : (1, D)     output-projection bias
      o_ref       : (B*S, D)   flattened output
      out_scratch : (B, S, D)  head-concatenated attention output (VMEM scratch)
    """
    B, S, D = out_scratch.shape
    H, hd = NUM_HEADS, HEAD_DIM

    # --- QKV projection: one lane-dense MXU matmul (B*S, D) @ (D, 3D). ------
    qkv = jnp.dot(x_ref[...], wqkv_ref[...],
                  preferred_element_type=jnp.float32) + bqkv_ref[...]      # (B*S, 3D)

    # (B*S, 3D) -> (B, S, 3D) via tile-aligned sublane slices + major-axis stack.
    qkv3 = jnp.stack([qkv[b * S:(b + 1) * S] for b in range(B)], axis=0)    # (B, S, 3D)

    # --- Attention core: per-head, batched over B.  hd=4 / S=8 so this part is
    #     occupancy-bound no matter what; kept simple (see review note). ------
    for h in range(H):                                   # static unroll, H tiny
        lo, hi = h * hd, (h + 1) * hd
        qh = qkv3[:, :, lo:hi]                           # (B, S, hd); SCALE folded in
        kh = qkv3[:, :, D + lo:D + hi]                   # (B, S, hd)
        vh = qkv3[:, :, 2 * D + lo:2 * D + hi]           # (B, S, hd)

        s = jnp.einsum("bqd,bkd->bqk", qh, kh,
                       preferred_element_type=jnp.float32)                  # (B, S, S)
        s = s - jnp.max(s, axis=-1, keepdims=True)
        e = jnp.exp(s)
        p = e * pl.reciprocal(jnp.sum(e, axis=-1, keepdims=True), approx=True)

        out_scratch[:, :, lo:hi] = jnp.einsum(
            "bqk,bkd->bqd", p, vh, preferred_element_type=jnp.float32)      # (B, S, hd)

    # --- Output projection: one matmul; phi^(-h) already folded into wo rows. --
    out2d = jnp.concatenate([out_scratch[b] for b in range(B)], axis=0)      # (B*S, D)
    y = jnp.dot(out2d, wo_ref[...], preferred_element_type=jnp.float32) + bo_ref[...]
    o_ref[...] = y.astype(o_ref.dtype)                   # single full-block store

    # TODO(synk): optional attention `mask` argument of the PyTorch forward is
    # not plumbed through (mask=None default path only).


def prepare_weights(params):
    """Host-side, ONCE at init: pack / transpose / fold constants into weights."""
    # Packed projection: columns [q-heads | k-heads | v-heads], head-major within
    # each block (matches PyTorch's view(B, S, H, hd)).  SCALE folded into q.
    wqkv = jnp.concatenate(
        [params["wq"].T * SCALE, params["wk"].T, params["wv"].T], axis=1)    # (D, 3D)
    bqkv = jnp.concatenate(
        [params["bq"] * SCALE, params["bk"], params["bv"]], axis=1)          # (1, 3D)

    # phi^(-h) modulation folded into the Wo^T rows belonging to head h.
    phi_rows = jnp.repeat(
        jnp.asarray([PHI ** (-h) for h in range(NUM_HEADS)], jnp.float32), HEAD_DIM)
    wo = params["wo"].T * phi_rows[:, None]                                  # (D, D)
    bo = params["bo"]                                                        # (1, D)
    return wqkv, bqkv, wo, bo


@jax.jit
def fractal_attention(x, wqkv, bqkv, wo, bo):
    """x: (B, S, D) float32; remaining args are prepared once by prepare_weights."""
    B, S, D = x.shape
    vmem = pl.BlockSpec(memory_space=pltpu.MemorySpace.VMEM)
    out2d = pl.pallas_call(
        fractal_attention_kernel,
        out_shape=jax.ShapeDtypeStruct((B * S, D), jnp.float32),
        # Single gridless invocation: whole working set (~50 KB) VMEM resident.
        in_specs=[vmem] * 5,
        out_specs=vmem,
        scratch_shapes=[pltpu.VMEM((B, S, D), jnp.float32)],
    )(x.reshape(B * S, D), wqkv, bqkv, wo, bo)
    return out2d.reshape(B, S, D)


# ---------------- pure-JAX reference (mirrors the PyTorch forward) ----------------
def fractal_attention_ref(x, params):
    B, S, D = x.shape

    def linear(t, w, b):
        return t @ w.T + b[0]

    q = linear(x, params["wq"], params["bq"]).reshape(B, S, NUM_HEADS, HEAD_DIM).transpose(0, 2, 1, 3)
    k = linear(x, params["wk"], params["bk"]).reshape(B, S, NUM_HEADS, HEAD_DIM).transpose(0, 2, 1, 3)
    v = linear(x, params["wv"], params["bv"]).reshape(B, S, NUM_HEADS, HEAD_DIM).transpose(0, 2, 1, 3)

    attn = jnp.einsum("bhqd,bhkd->bhqk", q, k) * SCALE
    attn = jax.nn.softmax(attn, axis=-1)
    scales = jnp.array([PHI ** (-i) for i in range(NUM_HEADS)], jnp.float32).reshape(1, NUM_HEADS, 1, 1)
    attn = attn * scales
    out = jnp.einsum("bhqk,bhkd->bhqd", attn, v)
    out = out.transpose(0, 2, 1, 3).reshape(B, S, D)
    return linear(out, params["wo"], params["bo"])


def init_params(key):
    """Deterministic synthetic parameters (PyTorch nn.Linear layout: (out, in))."""
    ks = jax.random.split(key, 8)
    bound = 1.0 / math.sqrt(DIM)

    def u(k, shape):
        return jax.random.uniform(k, shape, jnp.float32, -bound, bound)

    return {
        "wq": u(ks[0], (DIM, DIM)), "bq": u(ks[1], (1, DIM)),
        "wk": u(ks[2], (DIM, DIM)), "bk": u(ks[3], (1, DIM)),
        "wv": u(ks[4], (DIM, DIM)), "bv": u(ks[5], (1, DIM)),
        "wo": u(ks[6], (DIM, DIM)), "bo": u(ks[7], (1, DIM)),
    }


if __name__ == "__main__":
    root = jax.random.PRNGKey(0)
    kx, kp = jax.random.split(root)

    x = jax.random.normal(kx, (BATCH, SEQ, DIM), jnp.float32)
    params = init_params(kp)

    # Weight packing / constant folding done ONCE, outside the call path.
    wqkv, bqkv, wo, bo = prepare_weights(params)

    out = jax.block_until_ready(fractal_attention(x, wqkv, bqkv, wo, bo))
    ref = fractal_attention_ref(x, params)

    assert out.shape == (BATCH, SEQ, DIM)
    assert jnp.allclose(out, ref, rtol=5e-3, atol=5e-3), "mismatch vs reference"

    print("KERNEL_OK")
</pallas_src>

<mosaic_0001>
module attributes {stable_mosaic.version = 11 : i64} {
  func.func @fractal_attention_kernel(%arg0: memref<16x32xf32, #tpu.memory_space<vmem>>, %arg1: memref<32x96xf32, #tpu.memory_space<vmem>>, %arg2: memref<1x96xf32, #tpu.memory_space<vmem>>, %arg3: memref<32x32xf32, #tpu.memory_space<vmem>>, %arg4: memref<1x32xf32, #tpu.memory_space<vmem>>, %arg5: memref<16x32xf32, #tpu.memory_space<vmem>>, %arg6: memref<2x8x32xf32, #tpu.memory_space<vmem>>) attributes {dimension_semantics = [], scalar_prefetch = 0 : i64, scratch_operands = 1 : i64, tpu.core_type = #tpu.core_type<tc>} {
    %c0 = arith.constant 0 : index
    %c0_0 = arith.constant 0 : index
    %0 = vector.load %arg0[%c0, %c0_0] : memref<16x32xf32, #tpu.memory_space<vmem>>, vector<16x32xf32>
    %c0_1 = arith.constant 0 : index
    %c0_2 = arith.constant 0 : index
    %1 = vector.load %arg1[%c0_1, %c0_2] : memref<32x96xf32, #tpu.memory_space<vmem>>, vector<32x96xf32>
    %cst = arith.constant dense<0.000000e+00> : vector<16x96xf32>
    %2 = tpu.matmul %0, %1, %cst {dimension_numbers = #tpu.dot_dimension_numbers<[1], [0], [0], [1], [0, 0, 1, 1], [], []>} : vector<16x32xf32>, vector<32x96xf32>, vector<16x96xf32> -> vector<16x96xf32>
    %c0_3 = arith.constant 0 : index
    %c0_4 = arith.constant 0 : index
    %3 = vector.load %arg2[%c0_3, %c0_4] : memref<1x96xf32, #tpu.memory_space<vmem>>, vector<1x96xf32>
    %4 = vector.broadcast %3 : vector<1x96xf32> to vector<16x96xf32>
    %5 = arith.addf %2, %4 : vector<16x96xf32>
    %6 = vector.extract_strided_slice %5 {offsets = [0, 0], sizes = [8, 96], strides = [1, 1]} : vector<16x96xf32> to vector<8x96xf32>
    %7 = vector.extract_strided_slice %5 {offsets = [8, 0], sizes = [8, 96], strides = [1, 1]} : vector<16x96xf32> to vector<8x96xf32>
    %8 = vector.shape_cast %6 : vector<8x96xf32> to vector<1x8x96xf32>
    %9 = vector.shape_cast %7 : vector<8x96xf32> to vector<1x8x96xf32>
    %10 = tpu.concatenate %8, %9 in 0 : vector<1x8x96xf32>, vector<1x8x96xf32> -> vector<2x8x96xf32>
    %11 = vector.extract_strided_slice %10 {offsets = [0, 0, 0], sizes = [2, 8, 4], strides = [1, 1, 1]} : vector<2x8x96xf32> to vector<2x8x4xf32>
    %12 = vector.extract_strided_slice %10 {offsets = [0, 0, 32], sizes = [2, 8, 4], strides = [1, 1, 1]} : vector<2x8x96xf32> to vector<2x8x4xf32>
    %13 = vector.extract_strided_slice %10 {offsets = [0, 0, 64], sizes = [2, 8, 4], strides = [1, 1, 1]} : vector<2x8x96xf32> to vector<2x8x4xf32>
    "tpu.trace_start"() <{level = 10 : i32, message = "bqd,bkd->bqk"}> : () -> ()
    %cst_5 = arith.constant dense<0.000000e+00> : vector<2x8x8xf32>
    %14 = tpu.matmul %11, %12, %cst_5 {dimension_numbers = #tpu.dot_dimension_numbers<[2], [2], [1], [1], [0, 0, 0, 1, 1, 1], [0], [0]>} : vector<2x8x4xf32>, vector<2x8x4xf32>, vector<2x8x8xf32> -> vector<2x8x8xf32>
    "tpu.trace_stop"() : () -> ()
    %cst_6 = arith.constant dense<0xFF800000> : vector<2x8xf32>
    %15 = vector.multi_reduction <maximumf>, %14, %cst_6 [2] : vector<2x8x8xf32> to vector<2x8xf32>
    %16 = vector.shape_cast %15 : vector<2x8xf32> to vector<2x8x1xf32>
    %17 = vector.broadcast %16 : vector<2x8x1xf32> to vector<2x8x8xf32>
    %18 = arith.subf %14, %17 : vector<2x8x8xf32>
    %19 = math.exp %18 : vector<2x8x8xf32>
    %cst_7 = arith.constant dense<0.000000e+00> : vector<2x8xf32>
    %20 = vector.multi_reduction <add>, %19, %cst_7 [2] : vector<2x8x8xf32> to vector<2x8xf32>
    %21 = vector.shape_cast %20 : vector<2x8xf32> to vector<2x8x1xf32>
    %22 = tpu.reciprocal %21 {approx = true} : vector<2x8x1xf32> -> vector<2x8x1xf32>
    %23 = vector.broadcast %22 : vector<2x8x1xf32> to vector<2x8x8xf32>
    %24 = arith.mulf %19, %23 : vector<2x8x8xf32>
    "tpu.trace_start"() <{level = 10 : i32, message = "bqk,bkd->bqd"}> : () -> ()
    %cst_8 = arith.constant dense<0.000000e+00> : vector<2x8x4xf32>
    %25 = tpu.matmul %24, %13, %cst_8 {dimension_numbers = #tpu.dot_dimension_numbers<[2], [1], [1], [2], [0, 0, 0, 1, 1, 2], [0], [0]>} : vector<2x8x8xf32>, vector<2x8x4xf32>, vector<2x8x4xf32> -> vector<2x8x4xf32>
    "tpu.trace_stop"() : () -> ()
    %c0_9 = arith.constant 0 : index
    %c0_10 = arith.constant 0 : index
    %c0_11 = arith.constant 0 : index
    %26 = vector.load %arg6[%c0_9, %c0_10, %c0_11] : memref<2x8x32xf32, #tpu.memory_space<vmem>>, vector<2x8x4xf32>
    tpu.vector_store %arg6[%c0_9, %c0_10, %c0_11], %25 {strides = array<i32>} : memref<2x8x32xf32, #tpu.memory_space<vmem>>, vector<2x8x4xf32>,
    %27 = vector.extract_strided_slice %10 {offsets = [0, 0, 4], sizes = [2, 8, 4], strides = [1, 1, 1]} : vector<2x8x96xf32> to vector<2x8x4xf32>
    %28 = vector.extract_strided_slice %10 {offsets = [0, 0, 36], sizes = [2, 8, 4], strides = [1, 1, 1]} : vector<2x8x96xf32> to vector<2x8x4xf32>
    %29 = vector.extract_strided_slice %10 {offsets = [0, 0, 68], sizes = [2, 8, 4], strides = [1, 1, 1]} : vector<2x8x96xf32> to vector<2x8x4xf32>
    "tpu.trace_start"() <{level = 10 : i32, message = "bqd,bkd->bqk"}> : () -> ()
    %cst_12 = arith.constant dense<0.000000e+00> : vector<2x8x8xf32>
    %30 = tpu.matmul %27, %28, %cst_12 {dimension_numbers = #tpu.dot_dimension_numbers<[2], [2], [1], [1], [0, 0, 0, 1, 1, 1], [0], [0]>} : vector<2x8x4xf32>, vector<2x8x4xf32>, vector<2x8x8xf32> -> vector<2x8x8xf32>
    "tpu.trace_stop"() : () -> ()
    %cst_13 = arith.constant dense<0xFF800000> : vector<2x8xf32>
    %31 = vector.multi_reduction <maximumf>, %30, %cst_13 [2] : vector<2x8x8xf32> to vector<2x8xf32>
    %32 = vector.shape_cast %31 : vector<2x8xf32> to vector<2x8x1xf32>
    %33 = vector.broadcast %32 : vector<2x8x1xf32> to vector<2x8x8xf32>
    %34 = arith.subf %30, %33 : vector<2x8x8xf32>
    %35 = math.exp %34 : vector<2x8x8xf32>
    %cst_14 = arith.constant dense<0.000000e+00> : vector<2x8xf32>
    %36 = vector.multi_reduction <add>, %35, %cst_14 [2] : vector<2x8x8xf32> to vector<2x8xf32>
    %37 = vector.shape_cast %36 : vector<2x8xf32> to vector<2x8x1xf32>
    %38 = tpu.reciprocal %37 {approx = true} : vector<2x8x1xf32> -> vector<2x8x1xf32>
    %39 = vector.broadcast %38 : vector<2x8x1xf32> to vector<2x8x8xf32>
    %40 = arith.mulf %35, %39 : vector<2x8x8xf32>
    "tpu.trace_start"() <{level = 10 : i32, message = "bqk,bkd->bqd"}> : () -> ()
    %cst_15 = arith.constant dense<0.000000e+00> : vector<2x8x4xf32>
    %41 = tpu.matmul %40, %29, %cst_15 {dimension_numbers = #tpu.dot_dimension_numbers<[2], [1], [1], [2], [0, 0, 0, 1, 1, 2], [0], [0]>} : vector<2x8x8xf32>, vector<2x8x4xf32>, vector<2x8x4xf32> -> vector<2x8x4xf32>
    "tpu.trace_stop"() : () -> ()
    %c0_16 = arith.constant 0 : index
    %c0_17 = arith.constant 0 : index
    %c4 = arith.constant 4 : index
    %42 = vector.load %arg6[%c0_16, %c0_17, %c4] : memref<2x8x32xf32, #tpu.memory_space<vmem>>, vector<2x8x4xf32>
    tpu.vector_store %arg6[%c0_16, %c0_17, %c4], %41 {strides = array<i32>} : memref<2x8x32xf32, #tpu.memory_space<vmem>>, vector<2x8x4xf32>,
    %43 = vector.extract_strided_slice %10 {offsets = [0, 0, 8], sizes = [2, 8, 4], strides = [1, 1, 1]} : vector<2x8x96xf32> to vector<2x8x4xf32>
    %44 = vector.extract_strided_slice %10 {offsets = [0, 0, 40], sizes = [2, 8, 4], strides = [1, 1, 1]} : vector<2x8x96xf32> to vector<2x8x4xf32>
    %45 = vector.extract_strided_slice %10 {offsets = [0, 0, 72], sizes = [2, 8, 4], strides = [1, 1, 1]} : vector<2x8x96xf32> to vector<2x8x4xf32>
    "tpu.trace_start"() <{level = 10 : i32, message = "bqd,bkd->bqk"}> : () -> ()
    %cst_18 = arith.constant dense<0.000000e+00> : vector<2x8x8xf32>
    %46 = tpu.matmul %43, %44, %cst_18 {dimension_numbers = #tpu.dot_dimension_numbers<[2], [2], [1], [1], [0, 0, 0, 1, 1, 1], [0], [0]>} : vector<2x8x4xf32>, vector<2x8x4xf32>, vector<2x8x8xf32> -> vector<2x8x8xf32>
    "tpu.trace_stop"() : () -> ()
    %cst_19 = arith.constant dense<0xFF800000> : vector<2x8xf32>
    %47 = vector.multi_reduction <maximumf>, %46, %cst_19 [2] : vector<2x8x8xf32> to vector<2x8xf32>
    %48 = vector.shape_cast %47 : vector<2x8xf32> to vector<2x8x1xf32>
    %49 = vector.broadcast %48 : vector<2x8x1xf32> to vector<2x8x8xf32>
    %50 = arith.subf %46, %49 : vector<2x8x8xf32>
    %51 = math.exp %50 : vector<2x8x8xf32>
    %cst_20 = arith.constant dense<0.000000e+00> : vector<2x8xf32>
    %52 = vector.multi_reduction <add>, %51, %cst_20 [2] : vector<2x8x8xf32> to vector<2x8xf32>
    %53 = vector.shape_cast %52 : vector<2x8xf32> to vector<2x8x1xf32>
    %54 = tpu.reciprocal %53 {approx = true} : vector<2x8x1xf32> -> vector<2x8x1xf32>
    %55 = vector.broadcast %54 : vector<2x8x1xf32> to vector<2x8x8xf32>
    %56 = arith.mulf %51, %55 : vector<2x8x8xf32>
    "tpu.trace_start"() <{level = 10 : i32, message = "bqk,bkd->bqd"}> : () -> ()
    %cst_21 = arith.constant dense<0.000000e+00> : vector<2x8x4xf32>
    %57 = tpu.matmul %56, %45, %cst_21 {dimension_numbers = #tpu.dot_dimension_numbers<[2], [1], [1], [2], [0, 0, 0, 1, 1, 2], [0], [0]>} : vector<2x8x8xf32>, vector<2x8x4xf32>, vector<2x8x4xf32> -> vector<2x8x4xf32>
    "tpu.trace_stop"() : () -> ()
    %c0_22 = arith.constant 0 : index
    %c0_23 = arith.constant 0 : index
    %c8 = arith.constant 8 : index
    %58 = vector.load %arg6[%c0_22, %c0_23, %c8] : memref<2x8x32xf32, #tpu.memory_space<vmem>>, vector<2x8x4xf32>
    tpu.vector_store %arg6[%c0_22, %c0_23, %c8], %57 {strides = array<i32>} : memref<2x8x32xf32, #tpu.memory_space<vmem>>, vector<2x8x4xf32>,
    %59 = vector.extract_strided_slice %10 {offsets = [0, 0, 12], sizes = [2, 8, 4], strides = [1, 1, 1]} : vector<2x8x96xf32> to vector<2x8x4xf32>
    %60 = vector.extract_strided_slice %10 {offsets = [0, 0, 44], sizes = [2, 8, 4], strides = [1, 1, 1]} : vector<2x8x96xf32> to vector<2x8x4xf32>
    %61 = vector.extract_strided_slice %10 {offsets = [0, 0, 76], sizes = [2, 8, 4], strides = [1, 1, 1]} : vector<2x8x96xf32> to vector<2x8x4xf32>
    "tpu.trace_start"() <{level = 10 : i32, message = "bqd,bkd->bqk"}> : () -> ()
    %cst_24 = arith.constant dense<0.000000e+00> : vector<2x8x8xf32>
    %62 = tpu.matmul %59, %60, %cst_24 {dimension_numbers = #tpu.dot_dimension_numbers<[2], [2], [1], [1], [0, 0, 0, 1, 1, 1], [0], [0]>} : vector<2x8x4xf32>, vector<2x8x4xf32>, vector<2x8x8xf32> -> vector<2x8x8xf32>
    "tpu.trace_stop"() : () -> ()
    %cst_25 = arith.constant dense<0xFF800000> : vector<2x8xf32>
    %63 = vector.multi_reduction <maximumf>, %62, %cst_25 [2] : vector<2x8x8xf32> to vector<2x8xf32>
    %64 = vector.shape_cast %63 : vector<2x8xf32> to vector<2x8x1xf32>
    %65 = vector.broadcast %64 : vector<2x8x1xf32> to vector<2x8x8xf32>
    %66 = arith.subf %62, %65 : vector<2x8x8xf32>
    %67 = math.exp %66 : vector<2x8x8xf32>
    %cst_26 = arith.constant dense<0.000000e+00> : vector<2x8xf32>
    %68 = vector.multi_reduction <add>, %67, %cst_26 [2] : vector<2x8x8xf32> to vector<2x8xf32>
    %69 = vector.shape_cast %68 : vector<2x8xf32> to vector<2x8x1xf32>
    %70 = tpu.reciprocal %69 {approx = true} : vector<2x8x1xf32> -> vector<2x8x1xf32>
    %71 = vector.broadcast %70 : vector<2x8x1xf32> to vector<2x8x8xf32>
    %72 = arith.mulf %67, %71 : vector<2x8x8xf32>
    "tpu.trace_start"() <{level = 10 : i32, message = "bqk,bkd->bqd"}> : () -> ()
    %cst_27 = arith.constant dense<0.000000e+00> : vector<2x8x4xf32>
    %73 = tpu.matmul %72, %61, %cst_27 {dimension_numbers = #tpu.dot_dimension_numbers<[2], [1], [1], [2], [0, 0, 0, 1, 1, 2], [0], [0]>} : vector<2x8x8xf32>, vector<2x8x4xf32>, vector<2x8x4xf32> -> vector<2x8x4xf32>
    "tpu.trace_stop"() : () -> ()
    %c0_28 = arith.constant 0 : index
    %c0_29 = arith.constant 0 : index
    %c12 = arith.constant 12 : index
    %74 = vector.load %arg6[%c0_28, %c0_29, %c12] : memref<2x8x32xf32, #tpu.memory_space<vmem>>, vector<2x8x4xf32>
    tpu.vector_store %arg6[%c0_28, %c0_29, %c12], %73 {strides = array<i32>} : memref<2x8x32xf32, #tpu.memory_space<vmem>>, vector<2x8x4xf32>,
    %75 = vector.extract_strided_slice %10 {offsets = [0, 0, 16], sizes = [2, 8, 4], strides = [1, 1, 1]} : vector<2x8x96xf32> to vector<2x8x4xf32>
    %76 = vector.extract_strided_slice %10 {offsets = [0, 0, 48], sizes = [2, 8, 4], strides = [1, 1, 1]} : vector<2x8x96xf32> to vector<2x8x4xf32>
    %77 = vector.extract_strided_slice %10 {offsets = [0, 0, 80], sizes = [2, 8, 4], strides = [1, 1, 1]} : vector<2x8x96xf32> to vector<2x8x4xf32>
    "tpu.trace_start"() <{level = 10 : i32, message = "bqd,bkd->bqk"}> : () -> ()
    %cst_30 = arith.constant dense<0.000000e+00> : vector<2x8x8xf32>
    %78 = tpu.matmul %75, %76, %cst_30 {dimension_numbers = #tpu.dot_dimension_numbers<[2], [2], [1], [1], [0, 0, 0, 1, 1, 1], [0], [0]>} : vector<2x8x4xf32>, vector<2x8x4xf32>, vector<2x8x8xf32> -> vector<2x8x8xf32>
    "tpu.trace_stop"() : () -> ()
    %cst_31 = arith.constant dense<0xFF800000> : vector<2x8xf32>
    %79 = vector.multi_reduction <maximumf>, %78, %cst_31 [2] : vector<2x8x8xf32> to vector<2x8xf32>
    %80 = vector.shape_cast %79 : vector<2x8xf32> to vector<2x8x1xf32>
    %81 = vector.broadcast %80 : vector<2x8x1xf32> to vector<2x8x8xf32>
    %82 = arith.subf %78, %81 : vector<2x8x8xf32>
    %83 = math.exp %82 : vector<2x8x8xf32>
    %cst_32 = arith.constant dense<0.000000e+00> : vector<2x8xf32>
    %84 = vector.multi_reduction <add>, %83, %cst_32 [2] : vector<2x8x8xf32> to vector<2x8xf32>
    %85 = vector.shape_cast %84 : vector<2x8xf32> to vector<2x8x1xf32>
    %86 = tpu.reciprocal %85 {approx = true} : vector<2x8x1xf32> -> vector<2x8x1xf32>
    %87 = vector.broadcast %86 : vector<2x8x1xf32> to vector<2x8x8xf32>
    %88 = arith.mulf %83, %87 : vector<2x8x8xf32>
    "tpu.trace_start"() <{level = 10 : i32, message = "bqk,bkd->bqd"}> : () -> ()
    %cst_33 = arith.constant dense<0.000000e+00> : vector<2x8x4xf32>
    %89 = tpu.matmul %88, %77, %cst_33 {dimension_numbers = #tpu.dot_dimension_numbers<[2], [1], [1], [2], [0, 0, 0, 1, 1, 2], [0], [0]>} : vector<2x8x8xf32>, vector<2x8x4xf32>, vector<2x8x4xf32> -> vector<2x8x4xf32>
    "tpu.trace_stop"() : () -> ()
    %c0_34 = arith.constant 0 : index
    %c0_35 = arith.constant 0 : index
    %c16 = arith.constant 16 : index
    %90 = vector.load %arg6[%c0_34, %c0_35, %c16] : memref<2x8x32xf32, #tpu.memory_space<vmem>>, vector<2x8x4xf32>
    tpu.vector_store %arg6[%c0_34, %c0_35, %c16], %89 {strides = array<i32>} : memref<2x8x32xf32, #tpu.memory_space<vmem>>, vector<2x8x4xf32>,
    %91 = vector.extract_strided_slice %10 {offsets = [0, 0, 20], sizes = [2, 8, 4], strides = [1, 1, 1]} : vector<2x8x96xf32> to vector<2x8x4xf32>
    %92 = vector.extract_strided_slice %10 {offsets = [0, 0, 52], sizes = [2, 8, 4], strides = [1, 1, 1]} : vector<2x8x96xf32> to vector<2x8x4xf32>
    %93 = vector.extract_strided_slice %10 {offsets = [0, 0, 84], sizes = [2, 8, 4], strides = [1, 1, 1]} : vector<2x8x96xf32> to vector<2x8x4xf32>
    "tpu.trace_start"() <{level = 10 : i32, message = "bqd,bkd->bqk"}> : () -> ()
    %cst_36 = arith.constant dense<0.000000e+00> : vector<2x8x8xf32>
    %94 = tpu.matmul %91, %92, %cst_36 {dimension_numbers = #tpu.dot_dimension_numbers<[2], [2], [1], [1], [0, 0, 0, 1, 1, 1], [0], [0]>} : vector<2x8x4xf32>, vector<2x8x4xf32>, vector<2x8x8xf32> -> vector<2x8x8xf32>
    "tpu.trace_stop"() : () -> ()
    %cst_37 = arith.constant dense<0xFF800000> : vector<2x8xf32>
    %95 = vector.multi_reduction <maximumf>, %94, %cst_37 [2] : vector<2x8x8xf32> to vector<2x8xf32>
    %96 = vector.shape_cast %95 : vector<2x8xf32> to vector<2x8x1xf32>
    %97 = vector.broadcast %96 : vector<2x8x1xf32> to vector<2x8x8xf32>
    %98 = arith.subf %94, %97 : vector<2x8x8xf32>
    %99 = math.exp %98 : vector<2x8x8xf32>
    %cst_38 = arith.constant dense<0.000000e+00> : vector<2x8xf32>
    %100 = vector.multi_reduction <add>, %99, %cst_38 [2] : vector<2x8x8xf32> to vector<2x8xf32>
    %101 = vector.shape_cast %100 : vector<2x8xf32> to vector<2x8x1xf32>
    %102 = tpu.reciprocal %101 {approx = true} : vector<2x8x1xf32> -> vector<2x8x1xf32>
    %103 = vector.broadcast %102 : vector<2x8x1xf32> to vector<2x8x8xf32>
    %104 = arith.mulf %99, %103 : vector<2x8x8xf32>
    "tpu.trace_start"() <{level = 10 : i32, message = "bqk,bkd->bqd"}> : () -> ()
    %cst_39 = arith.constant dense<0.000000e+00> : vector<2x8x4xf32>
    %105 = tpu.matmul %104, %93, %cst_39 {dimension_numbers = #tpu.dot_dimension_numbers<[2], [1], [1], [2], [0, 0, 0, 1, 1, 2], [0], [0]>} : vector<2x8x8xf32>, vector<2x8x4xf32>, vector<2x8x4xf32> -> vector<2x8x4xf32>
    "tpu.trace_stop"() : () -> ()
    %c0_40 = arith.constant 0 : index
    %c0_41 = arith.constant 0 : index
    %c20 = arith.constant 20 : index
    %106 = vector.load %arg6[%c0_40, %c0_41, %c20] : memref<2x8x32xf32, #tpu.memory_space<vmem>>, vector<2x8x4xf32>
    tpu.vector_store %arg6[%c0_40, %c0_41, %c20], %105 {strides = array<i32>} : memref<2x8x32xf32, #tpu.memory_space<vmem>>, vector<2x8x4xf32>,
    %107 = vector.extract_strided_slice %10 {offsets = [0, 0, 24], sizes = [2, 8, 4], strides = [1, 1, 1]} : vector<2x8x96xf32> to vector<2x8x4xf32>
    %108 = vector.extract_strided_slice %10 {offsets = [0, 0, 56], sizes = [2, 8, 4], strides = [1, 1, 1]} : vector<2x8x96xf32> to vector<2x8x4xf32>
    %109 = vector.extract_strided_slice %10 {offsets = [0, 0, 88], sizes = [2, 8, 4], strides = [1, 1, 1]} : vector<2x8x96xf32> to vector<2x8x4xf32>
    "tpu.trace_start"() <{level = 10 : i32, message = "bqd,bkd->bqk"}> : () -> ()
    %cst_42 = arith.constant dense<0.000000e+00> : vector<2x8x8xf32>
    %110 = tpu.matmul %107, %108, %cst_42 {dimension_numbers = #tpu.dot_dimension_numbers<[2], [2], [1], [1], [0, 0, 0, 1, 1, 1], [0], [0]>} : vector<2x8x4xf32>, vector<2x8x4xf32>, vector<2x8x8xf32> -> vector<2x8x8xf32>
    "tpu.trace_stop"() : () -> ()
    %cst_43 = arith.constant dense<0xFF800000> : vector<2x8xf32>
    %111 = vector.multi_reduction <maximumf>, %110, %cst_43 [2] : vector<2x8x8xf32> to vector<2x8xf32>
    %112 = vector.shape_cast %111 : vector<2x8xf32> to vector<2x8x1xf32>
    %113 = vector.broadcast %112 : vector<2x8x1xf32> to vector<2x8x8xf32>
    %114 = arith.subf %110, %113 : vector<2x8x8xf32>
    %115 = math.exp %114 : vector<2x8x8xf32>
    %cst_44 = arith.constant dense<0.000000e+00> : vector<2x8xf32>
    %116 = vector.multi_reduction <add>, %115, %cst_44 [2] : vector<2x8x8xf32> to vector<2x8xf32>
    %117 = vector.shape_cast %116 : vector<2x8xf32> to vector<2x8x1xf32>
    %118 = tpu.reciprocal %117 {approx = true} : vector<2x8x1xf32> -> vector<2x8x1xf32>
    %119 = vector.broadcast %118 : vector<2x8x1xf32> to vector<2x8x8xf32>
    %120 = arith.mulf %115, %119 : vector<2x8x8xf32>
    "tpu.trace_start"() <{level = 10 : i32, message = "bqk,bkd->bqd"}> : () -> ()
    %cst_45 = arith.constant dense<0.000000e+00> : vector<2x8x4xf32>
    %121 = tpu.matmul %120, %109, %cst_45 {dimension_numbers = #tpu.dot_dimension_numbers<[2], [1], [1], [2], [0, 0, 0, 1, 1, 2], [0], [0]>} : vector<2x8x8xf32>, vector<2x8x4xf32>, vector<2x8x4xf32> -> vector<2x8x4xf32>
    "tpu.trace_stop"() : () -> ()
    %c0_46 = arith.constant 0 : index
    %c0_47 = arith.constant 0 : index
    %c24 = arith.constant 24 : index
    %122 = vector.load %arg6[%c0_46, %c0_47, %c24] : memref<2x8x32xf32, #tpu.memory_space<vmem>>, vector<2x8x4xf32>
    tpu.vector_store %arg6[%c0_46, %c0_47, %c24], %121 {strides = array<i32>} : memref<2x8x32xf32, #tpu.memory_space<vmem>>, vector<2x8x4xf32>,
    %123 = vector.extract_strided_slice %10 {offsets = [0, 0, 28], sizes = [2, 8, 4], strides = [1, 1, 1]} : vector<2x8x96xf32> to vector<2x8x4xf32>
    %124 = vector.extract_strided_slice %10 {offsets = [0, 0, 60], sizes = [2, 8, 4], strides = [1, 1, 1]} : vector<2x8x96xf32> to vector<2x8x4xf32>
    %125 = vector.extract_strided_slice %10 {offsets = [0, 0, 92], sizes = [2, 8, 4], strides = [1, 1, 1]} : vector<2x8x96xf32> to vector<2x8x4xf32>
    "tpu.trace_start"() <{level = 10 : i32, message = "bqd,bkd->bqk"}> : () -> ()
    %cst_48 = arith.constant dense<0.000000e+00> : vector<2x8x8xf32>
    %126 = tpu.matmul %123, %124, %cst_48 {dimension_numbers = #tpu.dot_dimension_numbers<[2], [2], [1], [1], [0, 0, 0, 1, 1, 1], [0], [0]>} : vector<2x8x4xf32>, vector<2x8x4xf32>, vector<2x8x8xf32> -> vector<2x8x8xf32>
    "tpu.trace_stop"() : () -> ()
    %cst_49 = arith.constant dense<0xFF800000> : vector<2x8xf32>
    %127 = vector.multi_reduction <maximumf>, %126, %cst_49 [2] : vector<2x8x8xf32> to vector<2x8xf32>
    %128 = vector.shape_cast %127 : vector<2x8xf32> to vector<2x8x1xf32>
    %129 = vector.broadcast %128 : vector<2x8x1xf32> to vector<2x8x8xf32>
    %130 = arith.subf %126, %129 : vector<2x8x8xf32>
    %131 = math.exp %130 : vector<2x8x8xf32>
    %cst_50 = arith.constant dense<0.000000e+00> : vector<2x8xf32>
    %132 = vector.multi_reduction <add>, %131, %cst_50 [2] : vector<2x8x8xf32> to vector<2x8xf32>
    %133 = vector.shape_cast %132 : vector<2x8xf32> to vector<2x8x1xf32>
    %134 = tpu.reciprocal %133 {approx = true} : vector<2x8x1xf32> -> vector<2x8x1xf32>
    %135 = vector.broadcast %134 : vector<2x8x1xf32> to vector<2x8x8xf32>
    %136 = arith.mulf %131, %135 : vector<2x8x8xf32>
    "tpu.trace_start"() <{level = 10 : i32, message = "bqk,bkd->bqd"}> : () -> ()
    %cst_51 = arith.constant dense<0.000000e+00> : vector<2x8x4xf32>
    %137 = tpu.matmul %136, %125, %cst_51 {dimension_numbers = #tpu.dot_dimension_numbers<[2], [1], [1], [2], [0, 0, 0, 1, 1, 2], [0], [0]>} : vector<2x8x8xf32>, vector<2x8x4xf32>, vector<2x8x4xf32> -> vector<2x8x4xf32>
    "tpu.trace_stop"() : () -> ()
    %c0_52 = arith.constant 0 : index
    %c0_53 = arith.constant 0 : index
    %c28 = arith.constant 28 : index
    %138 = vector.load %arg6[%c0_52, %c0_53, %c28] : memref<2x8x32xf32, #tpu.memory_space<vmem>>, vector<2x8x4xf32>
    tpu.vector_store %arg6[%c0_52, %c0_53, %c28], %137 {strides = array<i32>} : memref<2x8x32xf32, #tpu.memory_space<vmem>>, vector<2x8x4xf32>,
    %c0_54 = arith.constant 0 : index
    %c0_55 = arith.constant 0 : index
    %c0_56 = arith.constant 0 : index
    %139 = vector.load %arg6[%c0_54, %c0_55, %c0_56] : memref<2x8x32xf32, #tpu.memory_space<vmem>>, vector<1x8x32xf32>
    %140 = vector.shape_cast %139 : vector<1x8x32xf32> to vector<8x32xf32>
    %c1 = arith.constant 1 : index
    %c0_57 = arith.constant 0 : index
    %c0_58 = arith.constant 0 : index
    %141 = vector.load %arg6[%c1, %c0_57, %c0_58] : memref<2x8x32xf32, #tpu.memory_space<vmem>>, vector<1x8x32xf32>
    %142 = vector.shape_cast %141 : vector<1x8x32xf32> to vector<8x32xf32>
    %143 = tpu.concatenate %140, %142 in 0 : vector<8x32xf32>, vector<8x32xf32> -> vector<16x32xf32>
    %c0_59 = arith.constant 0 : index
    %c0_60 = arith.constant 0 : index
    %144 = vector.load %arg3[%c0_59, %c0_60] : memref<32x32xf32, #tpu.memory_space<vmem>>, vector<32x32xf32>
    %cst_61 = arith.constant dense<0.000000e+00> : vector<16x32xf32>
    %145 = tpu.matmul %143, %144, %cst_61 {dimension_numbers = #tpu.dot_dimension_numbers<[1], [0], [0], [1], [0, 0, 1, 1], [], []>} : vector<16x32xf32>, vector<32x32xf32>, vector<16x32xf32> -> vector<16x32xf32>
    %c0_62 = arith.constant 0 : index
    %c0_63 = arith.constant 0 : index
    %146 = vector.load %arg4[%c0_62, %c0_63] : memref<1x32xf32, #tpu.memory_space<vmem>>, vector<1x32xf32>
    %147 = vector.broadcast %146 : vector<1x32xf32> to vector<16x32xf32>
    %148 = arith.addf %145, %147 : vector<16x32xf32>
    %c0_64 = arith.constant 0 : index
    %c0_65 = arith.constant 0 : index
    %149 = vector.load %arg5[%c0_64, %c0_65] : memref<16x32xf32, #tpu.memory_space<vmem>>, vector<16x32xf32>
    tpu.vector_store %arg5[%c0_64, %c0_65], %148 {strides = array<i32>} : memref<16x32xf32, #tpu.memory_space<vmem>>, vector<16x32xf32>,
    return
  }
}

</mosaic_0001>

<llo_original>
// kernel: fractal_attention.1
$region0: #{fractal_attention.1}
  #allocation0 [shape = 'u32[]', space=smem, size = 0x4, offset = 0x4, fixed_abs, tag = 'smem constant byte address 0x4 - core index']
  #allocation1 [shape = 'u32[72,128]{1,0:T(1,128)}', space=vmem, size = 0x9000, scoped, tag = 'internal scratch']
  #allocation2 [shape = 'f32[2,8,32]{2,1,0:T(8,128)}', space=vmem, size = 0x2000, scoped, tag = 'scratch operand']
  %s0 = inlined_call_operand.hbm [shape: f32[16,32], index: 0, kind: input, shape index: {}]
  %s1 = inlined_call_operand.hbm [shape: f32[32,96], index: 1, kind: input, shape index: {}]
  %s2 = inlined_call_operand.vmem [shape: f32[1,96], index: 2, kind: input, shape index: {}]
  %s3 = inlined_call_operand.hbm [shape: f32[32,32], index: 3, kind: input, shape index: {}]
  %s4 = inlined_call_operand.vmem [shape: f32[1,32], index: 4, kind: input, shape index: {}]
  %s5 = inlined_call_operand.hbm [shape: f32[16,32], index: 5, kind: output, shape index: {}]
  %s6 = sld [smem:[#allocation0]]
  $region42: #{fractal_attention.1} parent=0
    _
  %s8 = ssub.s32 1, %s6
  %s9 = scalar_select 0, %s8, %s6
  $region1: #{fractal_attention.1} parent=0
    #allocation3 [shape = 'u8[8192]{0}', space=vmem, size = 0x2000, scoped, tag = 'input window, operand 0, single buffered']
    #allocation4 [shape = 's32[1]{0}', space=sflag, size = 0x4, scoped, tag = 'scoped memory for fractal_attention.1']
    #allocation5 [shape = 's32[1]{0}', space=sflag, size = 0x4, scoped, tag = 'scoped memory for fractal_attention.1']
    #allocation6 [shape = 'u8[16384]{0}', space=vmem, size = 0x4000, scoped, tag = 'input window, operand 1, single buffered']
    #allocation7 [shape = 's32[1]{0}', space=sflag, size = 0x4, scoped, tag = 'scoped memory for fractal_attention.1']
    #allocation8 [shape = 'u8[16384]{0}', space=vmem, size = 0x4000, scoped, tag = 'input window, operand 3, single buffered']
    #allocation9 [shape = 'u8[8192]{0}', space=vmem, size = 0x2000, scoped, tag = 'output window, operand 0, single buffered']
    %10 = vsyncpa [#allocation4], 0
    %11 = vsyncpa [#allocation7], 0
    %12 = vsyncpa [#allocation5], 0
    // Predicated region
    $region2: #{fractal_attention.1} parent=1 // pred_check
      _
    $region3: #{fractal_attention.1} parent=1 // pred_check_branch
      %14 = sbr.rel (0) target = $region5
    $region4: #{fractal_attention.1} parent=1 // pred_region
      %16 = vsyncadd [#allocation4], 0
      %s17 = sshll.u32 %s0, 4
      %s18 = int_to_ptr.hbm [resolvable:$true] %s17
      %s19 = sshll.u32 [#allocation3], 4
      %s20 = int_to_ptr.vmem [resolvable:$true] %s19
      %25 = dma.hbm_to_vmem [thread:$0]  %s18, 256, %s20, [#allocation4], 128, 128, 8
    $region5: #{fractal_attention.1} parent=1 // pred_fallthru
      _
    // Predicated region
    $region6: #{fractal_attention.1} parent=1 // pred_check
      _
    $region7: #{fractal_attention.1} parent=1 // pred_check_branch
      %27 = sbr.rel (0) target = $region9
    $region8: #{fractal_attention.1} parent=1 // pred_region
      %29 = vsyncadd [#allocation7], 0
      %s30 = sshll.u32 %s1, 4
      %s31 = int_to_ptr.hbm [resolvable:$true] %s30
      %s32 = sshll.u32 [#allocation6], 4
      %s33 = int_to_ptr.vmem [resolvable:$true] %s32
      %38 = dma.hbm_to_vmem [thread:$0]  %s31, 512, %s33, [#allocation7], 128, 128, 8
    $region9: #{fractal_attention.1} parent=1 // pred_fallthru
      _
    // Predicated region
    $region10: #{fractal_attention.1} parent=1 // pred_check
      _
    $region11: #{fractal_attention.1} parent=1 // pred_check_branch
      %40 = sbr.rel (0) target = $region13
    $region12: #{fractal_attention.1} parent=1 // pred_region
      _
    $region13: #{fractal_attention.1} parent=1 // pred_fallthru
      _
    // Predicated region
    $region14: #{fractal_attention.1} parent=1 // pred_check
      _
    $region15: #{fractal_attention.1} parent=1 // pred_check_branch
      %42 = sbr.rel (0) target = $region17
    $region16: #{fractal_attention.1} parent=1 // pred_region
      %44 = vsyncadd [#allocation7], 0
      %s45 = sshll.u32 %s3, 4
      %s46 = int_to_ptr.hbm [resolvable:$true] %s45
      %s47 = sshll.u32 [#allocation8], 4
      %s48 = int_to_ptr.vmem [resolvable:$true] %s47
      %53 = dma.hbm_to_vmem [thread:$0]  %s46, 512, %s48, [#allocation7], 128, 128, 8
    $region17: #{fractal_attention.1} parent=1 // pred_fallthru
      _
    // Predicated region
    $region18: #{fractal_attention.1} parent=1 // pred_check
      _
    $region19: #{fractal_attention.1} parent=1 // pred_check_branch
      %55 = sbr.rel (0) target = $region21
    $region20: #{fractal_attention.1} parent=1 // pred_region
      _
    $region21: #{fractal_attention.1} parent=1 // pred_fallthru
      _
    // Predicated region
    $region22: #{fractal_attention.1} parent=1 // pred_check
      _
    $region23: #{fractal_attention.1} parent=1 // pred_check_branch
      %57 = sbr.rel (0) target = $region25
    $region24: #{fractal_attention.1} parent=1 // pred_region
      %59 = dma.done [#allocation4], 256
    $region25: #{fractal_attention.1} parent=1 // pred_fallthru
      _
    // Predicated region
    $region26: #{fractal_attention.1} parent=1 // pred_check
      _
    $region27: #{fractal_attention.1} parent=1 // pred_check_branch
      %61 = sbr.rel (0) target = $region29
    $region28: #{fractal_attention.1} parent=1 // pred_region
      %63 = dma.done [#allocation7], 512
    $region29: #{fractal_attention.1} parent=1 // pred_fallthru
      _
    // Predicated region
    $region30: #{fractal_attention.1} parent=1 // pred_check
      _
    $region31: #{fractal_attention.1} parent=1 // pred_check_branch
      %65 = sbr.rel (0) target = $region33
    $region32: #{fractal_attention.1} parent=1 // pred_region
      %67 = dma.done [#allocation7], 512
    $region33: #{fractal_attention.1} parent=1 // pred_fallthru
      _
    %v68 = vld [vmem:[#allocation3] sm:$0xff]
    %v69 = vld [vmem:[#allocation3 + $0x8] sm:$0xff]
    %v70 = vld [vmem:[#allocation6] sm:$0xff]
    %v71 = vld [vmem:[#allocation6 + $0x8] sm:$0xff]
    %v72 = vld [vmem:[#allocation6 + $0x10] sm:$0xff]
    %v73 = vld [vmem:[#allocation6 + $0x18] sm:$0xff]
    %v74 = vld [vmem:[%s2] sm:$0x1]
    %v76 = vperm.slane %v74, 0
    %vm78 = vcmask 261120
    %v80 = vsel %vm78, %v68, 0
    %v83 = vsel %vm78, %v69, 0
    %85 = vmatpush.msra.mxu0 0.0
    %86 = vmatpush.msra.mxu0 0.0
    %87 = vmatpush.msra.mxu0 0.0
    %88 = vmatpush.msra.mxu0 0.0
    %89 = vmatpush.msra.mxu0 0.0
    %90 = vmatpush.msra.mxu0 0.0
    %91 = vmatpush.msra.mxu0 0.0
    %92 = vmatpush.msra.mxu0 0.0
    %93 = vmatpush.msra.mxu0 0.0
    %94 = vmatpush.msra.mxu0 0.0
    %95 = vmatpush.msra.mxu0 0.0
    %96 = vmatpush.msra.mxu0 0.0
    %97 = vmatpush.msra.mxu0 %v73
    %98 = vmatpush.msra.mxu0 %v72
    %99 = vmatpush.msra.mxu0 %v71
    %100 = vmatpush.msra.mxu0 %v70
    %101 = vmatmul.f32.gmra.mxu0 %v80
    %v102 = vpop.f32.mrf.mxu0
    %v103 = vadd.f32 %v76, %v102
    %104 = vmatmul.f32.gmra.mxu0 %v83
    %v105 = vpop.f32.mrf.mxu0
    %v106 = vadd.f32 %v76, %v105
    %107 = vdwg.mxu0
    %109 = vrot.lane.b32.xlu0 %v103, 96
    %v110 = vpop.permute.xlu0 %109
    %vm111 = vcmask 31744
    %v112 = vsel %vm111, %v103, 0
    %v114 = vsel %vm111, %v110, 0
    %116 = vmatpush.xpose.msra.mxu0 0.0
    %117 = vmatpush.xpose.msra.mxu0 0.0
    %118 = vmatpush.xpose.msra.mxu0 0.0
    %119 = vmatpush.xpose.msra.mxu0 0.0
    %120 = vmatpush.xpose.msra.mxu0 0.0
    %121 = vmatpush.xpose.msra.mxu0 0.0
    %122 = vmatpush.xpose.msra.mxu0 0.0
    %123 = vmatpush.xpose.msra.mxu0 0.0
    %124 = vmatpush.xpose.msra.mxu0 0.0
    %125 = vmatpush.xpose.msra.mxu0 0.0
    %126 = vmatpush.xpose.msra.mxu0 0.0
    %127 = vmatpush.xpose.msra.mxu0 0.0
    %128 = vmatpush.xpose.msra.mxu0 0.0
    %129 = vmatpush.xpose.msra.mxu0 0.0
    %130 = vmatpush.xpose.msra.mxu0 0.0
    %131 = vmatpush.xpose.msra.mxu0 %v114
    %132 = vmatmul.f32.gmra.mxu0 %v112
    %v133 = vpop.f32.mrf.mxu0
    %v134 = vadd.f32 0.0, %v133
    %135 = vdwg.mxu0
    %137 = vrot.lane.b32.xlu0 %v106, 96
    %v138 = vpop.permute.xlu0 %137
    %v139 = vsel %vm111, %v106, 0
    %v141 = vsel %vm111, %v138, 0
    %143 = vmatpush.xpose.msra.mxu0 0.0
    %144 = vmatpush.xpose.msra.mxu0 0.0
    %145 = vmatpush.xpose.msra.mxu0 0.0
    %146 = vmatpush.xpose.msra.mxu0 0.0
    %147 = vmatpush.xpose.msra.mxu0 0.0
    %148 = vmatpush.xpose.msra.mxu0 0.0
    %149 = vmatpush.xpose.msra.mxu0 0.0
    %150 = vmatpush.xpose.msra.mxu0 0.0
    %151 = vmatpush.xpose.msra.mxu0 0.0
    %152 = vmatpush.xpose.msra.mxu0 0.0
    %153 = vmatpush.xpose.msra.mxu0 0.0
    %154 = vmatpush.xpose.msra.mxu0 0.0
    %155 = vmatpush.xpose.msra.mxu0 0.0
    %156 = vmatpush.xpose.msra.mxu0 0.0
    %157 = vmatpush.xpose.msra.mxu0 0.0
    %158 = vmatpush.xpose.msra.mxu0 %v141
    %159 = vmatmul.f32.gmra.mxu0 %v139
    %v160 = vpop.f32.mrf.mxu0
    %v161 = vadd.f32 0.0, %v160
    %162 = vdwg.mxu0
    %vm163 = vcmask 64512
    %v164 = vsel %vm163, %v134, -inf
    %165 = vmax.xlane.f32.xlu0 %v164
    %v166 = vpop.xlane.xlu0 %165
    %v167 = vsel %vm163, %v161, -inf
    %168 = vmax.xlane.f32.xlu0 %v167
    %v169 = vpop.xlane.xlu0 %168
    %v170 = vsub.f32 %v134, %v166
    %v171 = vsub.f32 %v161, %v169
    %v172 = vmul.f32 %v170, 1.442695
    %v173 = vpow.pop %v172
    %v174 = vmul.f32 %v171, 1.442695
    %v175 = vpow.pop %v174
    %v176 = vsel %vm163, %v173, 0.0
    %177 = vadd.xlane.f32.xlu0 %v176
    %v178 = vpop.xlane.xlu0 %177
    %v179 = vsel %vm163, %v175, 0.0
    %180 = vadd.xlane.f32.xlu0 %v179
    %v181 = vpop.xlane.xlu0 %180
    %v182 = vrcp.pop %v178
    %v183 = vrcp.pop %v181
    %v184 = vmul.f32 %v173, %v182
    %v185 = vmul.f32 %v175, %v183
    %186 = vrot.lane.b32.xlu0 %v103, 64
    %v187 = vpop.permute.xlu0 %186
    %v190 = vsel %vm163, %v184, 0
    %192 = vmatpush.msra.mxu0 0.0
    %193 = vmatpush.msra.mxu0 0.0
    %194 = vmatpush.msra.mxu0 0.0
    %195 = vmatpush.msra.mxu0 0.0
    %196 = vmatpush.msra.mxu0 0.0
    %197 = vmatpush.msra.mxu0 0.0
    %198 = vmatpush.msra.mxu0 0.0
    %199 = vmatpush.msra.mxu0 0.0
    %200 = vmatpush.msra.mxu0 0.0
    %201 = vmatpush.msra.mxu0 0.0
    %202 = vmatpush.msra.mxu0 0.0
    %203 = vmatpush.msra.mxu0 0.0
    %204 = vmatpush.msra.mxu0 0.0
    %205 = vmatpush.msra.mxu0 0.0
    %206 = vmatpush.msra.mxu0 0.0
    %207 = vmatpush.msra.mxu0 %v187
    %208 = vmatmul.f32.gmra.mxu0 %v190
    %v209 = vpop.f32.mrf.mxu0
    %v210 = vadd.f32 0.0, %v209
    %211 = vdwg.mxu0
    %212 = vrot.lane.b32.xlu0 %v106, 64
    %v213 = vpop.permute.xlu0 %212
    %v216 = vsel %vm163, %v185, 0
    %218 = vmatpush.msra.mxu0 0.0
    %219 = vmatpush.msra.mxu0 0.0
    %220 = vmatpush.msra.mxu0 0.0
    %221 = vmatpush.msra.mxu0 0.0
    %222 = vmatpush.msra.mxu0 0.0
    %223 = vmatpush.msra.mxu0 0.0
    %224 = vmatpush.msra.mxu0 0.0
    %225 = vmatpush.msra.mxu0 0.0
    %226 = vmatpush.msra.mxu0 0.0
    %227 = vmatpush.msra.mxu0 0.0
    %228 = vmatpush.msra.mxu0 0.0
    %229 = vmatpush.msra.mxu0 0.0
    %230 = vmatpush.msra.mxu0 0.0
    %231 = vmatpush.msra.mxu0 0.0
    %232 = vmatpush.msra.mxu0 0.0
    %233 = vmatpush.msra.mxu0 %v213
    %234 = vmatmul.f32.gmra.mxu0 %v216
    %v235 = vpop.f32.mrf.mxu0
    %v236 = vadd.f32 0.0, %v235
    %237 = vdwg.mxu0
    %238 = vst.msk [vmem:[#allocation2] sm:$0xff] %vm111, %v210
    %239 = vst.msk [vmem:[#allocation2 + $0x8] sm:$0xff] %vm111, %v236
    %240 = vrot.lane.b32.xlu0 %v103, 124
    %v241 = vpop.permute.xlu0 %240
    %242 = vrot.lane.b32.xlu0 %v103, 92
    %v243 = vpop.permute.xlu0 %242
    %v244 = vsel %vm111, %v241, 0
    %v246 = vsel %vm111, %v243, 0
    %248 = vmatpush.xpose.msra.mxu0 0.0
    %249 = vmatpush.xpose.msra.mxu0 0.0
    %250 = vmatpush.xpose.msra.mxu0 0.0
    %251 = vmatpush.xpose.msra.mxu0 0.0
    %252 = vmatpush.xpose.msra.mxu0 0.0
    %253 = vmatpush.xpose.msra.mxu0 0.0
    %254 = vmatpush.xpose.msra.mxu0 0.0
    %255 = vmatpush.xpose.msra.mxu0 0.0
    %256 = vmatpush.xpose.msra.mxu0 0.0
    %257 = vmatpush.xpose.msra.mxu0 0.0
    %258 = vmatpush.xpose.msra.mxu0 0.0
    %259 = vmatpush.xpose.msra.mxu0 0.0
    %260 = vmatpush.xpose.msra.mxu0 0.0
    %261 = vmatpush.xpose.msra.mxu0 0.0
    %262 = vmatpush.xpose.msra.mxu0 0.0
    %263 = vmatpush.xpose.msra.mxu0 %v246
    %264 = vmatmul.f32.gmra.mxu0 %v244
    %v265 = vpop.f32.mrf.mxu0
    %v266 = vadd.f32 0.0, %v265
    %267 = vdwg.mxu0
    %268 = vrot.lane.b32.xlu0 %v106, 124
    %v269 = vpop.permute.xlu0 %268
    %270 = vrot.lane.b32.xlu0 %v106, 92
    %v271 = vpop.permute.xlu0 %270
    %v272 = vsel %vm111, %v269, 0
    %v274 = vsel %vm111, %v271, 0
    %276 = vmatpush.xpose.msra.mxu0 0.0
    %277 = vmatpush.xpose.msra.mxu0 0.0
    %278 = vmatpush.xpose.msra.mxu0 0.0
    %279 = vmatpush.xpose.msra.mxu0 0.0
    %280 = vmatpush.xpose.msra.mxu0 0.0
    %281 = vmatpush.xpose.msra.mxu0 0.0
    %282 = vmatpush.xpose.msra.mxu0 0.0
    %283 = vmatpush.xpose.msra.mxu0 0.0
    %284 = vmatpush.xpose.msra.mxu0 0.0
    %285 = vmatpush.xpose.msra.mxu0 0.0
    %286 = vmatpush.xpose.msra.mxu0 0.0
    %287 = vmatpush.xpose.msra.mxu0 0.0
    %288 = vmatpush.xpose.msra.mxu0 0.0
    %289 = vmatpush.xpose.msra.mxu0 0.0
    %290 = vmatpush.xpose.msra.mxu0 0.0
    %291 = vmatpush.xpose.msra.mxu0 %v274
    %292 = vmatmul.f32.gmra.mxu0 %v272
    %v293 = vpop.f32.mrf.mxu0
    %v294 = vadd.f32 0.0, %v293
    %295 = vdwg.mxu0
    %v296 = vsel %vm163, %v266, -inf
    %297 = vmax.xlane.f32.xlu0 %v296
    %v298 = vpop.xlane.xlu0 %297
    %v299 = vsel %vm163, %v294, -inf
    %300 = vmax.xlane.f32.xlu0 %v299
    %v301 = vpop.xlane.xlu0 %300
    %v302 = vsub.f32 %v266, %v298
    %v303 = vsub.f32 %v294, %v301
    %v304 = vmul.f32 %v302, 1.442695
    %v305 = vpow.pop %v304
    %v306 = vmul.f32 %v303, 1.442695
    %v307 = vpow.pop %v306
    %v308 = vsel %vm163, %v305, 0.0
    %309 = vadd.xlane.f32.xlu0 %v308
    %v310 = vpop.xlane.xlu0 %309
    %v311 = vsel %vm163, %v307, 0.0
    %312 = vadd.xlane.f32.xlu0 %v311
    %v313 = vpop.xlane.xlu0 %312
    %v314 = vrcp.pop %v310
    %v315 = vrcp.pop %v313
    %v316 = vmul.f32 %v305, %v314
    %v317 = vmul.f32 %v307, %v315
    %318 = vrot.lane.b32.xlu0 %v103, 60
    %v319 = vpop.permute.xlu0 %318
    %v322 = vsel %vm163, %v316, 0
    %324 = vmatpush.msra.mxu0 0.0
    %325 = vmatpush.msra.mxu0 0.0
    %326 = vmatpush.msra.mxu0 0.0
    %327 = vmatpush.msra.mxu0 0.0
    %328 = vmatpush.msra.mxu0 0.0
    %329 = vmatpush.msra.mxu0 0.0
    %330 = vmatpush.msra.mxu0 0.0
    %331 = vmatpush.msra.mxu0 0.0
    %332 = vmatpush.msra.mxu0 0.0
    %333 = vmatpush.msra.mxu0 0.0
    %334 = vmatpush.msra.mxu0 0.0
    %335 = vmatpush.msra.mxu0 0.0
    %336 = vmatpush.msra.mxu0 0.0
    %337 = vmatpush.msra.mxu0 0.0
    %338 = vmatpush.msra.mxu0 0.0
    %339 = vmatpush.msra.mxu0 %v319
    %340 = vmatmul.f32.gmra.mxu0 %v322
    %v341 = vpop.f32.mrf.mxu0
    %v342 = vadd.f32 0.0, %v341
    %343 = vdwg.mxu0
    %344 = vrot.lane.b32.xlu0 %v106, 60
    %v345 = vpop.permute.xlu0 %344
    %v348 = vsel %vm163, %v317, 0
    %350 = vmatpush.msra.mxu0 0.0
    %351 = vmatpush.msra.mxu0 0.0
    %352 = vmatpush.msra.mxu0 0.0
    %353 = vmatpush.msra.mxu0 0.0
    %354 = vmatpush.msra.mxu0 0.0
    %355 = vmatpush.msra.mxu0 0.0
    %356 = vmatpush.msra.mxu0 0.0
    %357 = vmatpush.msra.mxu0 0.0
    %358 = vmatpush.msra.mxu0 0.0
    %359 = vmatpush.msra.mxu0 0.0
    %360 = vmatpush.msra.mxu0 0.0
    %361 = vmatpush.msra.mxu0 0.0
    %362 = vmatpush.msra.mxu0 0.0
    %363 = vmatpush.msra.mxu0 0.0
    %364 = vmatpush.msra.mxu0 0.0
    %365 = vmatpush.msra.mxu0 %v345
    %366 = vmatmul.f32.gmra.mxu0 %v348
    %v367 = vpop.f32.mrf.mxu0
    %v368 = vadd.f32 0.0, %v367
    %369 = vdwg.mxu0
    %372 = vrot.lane.b32.xlu0 %v342, 4
    %v373 = vpop.permute.xlu0 %372
    %374 = vrot.lane.b32.xlu0 %v368, 4
    %v375 = vpop.permute.xlu0 %374
    %vm378 = vcmask 64544
    %379 = vst.msk [vmem:[#allocation2] sm:$0xff] %vm378, %v373
    %380 = vst.msk [vmem:[#allocation2 + $0x8] sm:$0xff] %vm378, %v375
    %381 = vrot.lane.b32.xlu0 %v103, 120
    %v382 = vpop.permute.xlu0 %381
    %383 = vrot.lane.b32.xlu0 %v103, 88
    %v384 = vpop.permute.xlu0 %383
    %v385 = vsel %vm111, %v382, 0
    %v387 = vsel %vm111, %v384, 0
    %389 = vmatpush.xpose.msra.mxu0 0.0
    %390 = vmatpush.xpose.msra.mxu0 0.0
    %391 = vmatpush.xpose.msra.mxu0 0.0
    %392 = vmatpush.xpose.msra.mxu0 0.0
    %393 = vmatpush.xpose.msra.mxu0 0.0
    %394 = vmatpush.xpose.msra.mxu0 0.0
    %395 = vmatpush.xpose.msra.mxu0 0.0
    %396 = vmatpush.xpose.msra.mxu0 0.0
    %397 = vmatpush.xpose.msra.mxu0 0.0
    %398 = vmatpush.xpose.msra.mxu0 0.0
    %399 = vmatpush.xpose.msra.mxu0 0.0
    %400 = vmatpush.xpose.msra.mxu0 0.0
    %401 = vmatpush.xpose.msra.mxu0 0.0
    %402 = vmatpush.xpose.msra.mxu0 0.0
    %403 = vmatpush.xpose.msra.mxu0 0.0
    %404 = vmatpush.xpose.msra.mxu0 %v387
    %405 = vmatmul.f32.gmra.mxu0 %v385
    %v406 = vpop.f32.mrf.mxu0
    %v407 = vadd.f32 0.0, %v406
    %408 = vdwg.mxu0
    %409 = vrot.lane.b32.xlu0 %v106, 120
    %v410 = vpop.permute.xlu0 %409
    %411 = vrot.lane.b32.xlu0 %v106, 88
    %v412 = vpop.permute.xlu0 %411
    %v413 = vsel %vm111, %v410, 0
    %v415 = vsel %vm111, %v412, 0
    %417 = vmatpush.xpose.msra.mxu0 0.0
    %418 = vmatpush.xpose.msra.mxu0 0.0
    %419 = vmatpush.xpose.msra.mxu0 0.0
    %420 = vmatpush.xpose.msra.mxu0 0.0
    %421 = vmatpush.xpose.msra.mxu0 0.0
    %422 = vmatpush.xpose.msra.mxu0 0.0
    %423 = vmatpush.xpose.msra.mxu0 0.0
    %424 = vmatpush.xpose.msra.mxu0 0.0
    %425 = vmatpush.xpose.msra.mxu0 0.0
    %426 = vmatpush.xpose.msra.mxu0 0.0
    %427 = vmatpush.xpose.msra.mxu0 0.0
    %428 = vmatpush.xpose.msra.mxu0 0.0
    %429 = vmatpush.xpose.msra.mxu0 0.0
    %430 = vmatpush.xpose.msra.mxu0 0.0
    %431 = vmatpush.xpose.msra.mxu0 0.0
    %432 = vmatpush.xpose.msra.mxu0 %v415
    %433 = vmatmul.f32.gmra.mxu0 %v413
    %v434 = vpop.f32.mrf.mxu0
    %v435 = vadd.f32 0.0, %v434
    %436 = vdwg.mxu0
    %v437 = vsel %vm163, %v407, -inf
    %438 = vmax.xlane.f32.xlu0 %v437
    %v439 = vpop.xlane.xlu0 %438
    %v440 = vsel %vm163, %v435, -inf
    %441 = vmax.xlane.f32.xlu0 %v440
    %v442 = vpop.xlane.xlu0 %441
    %v443 = vsub.f32 %v407, %v439
    %v444 = vsub.f32 %v435, %v442
    %v445 = vmul.f32 %v443, 1.442695
    %v446 = vpow.pop %v445
    %v447 = vmul.f32 %v444, 1.442695
    %v448 = vpow.pop %v447
    %v449 = vsel %vm163, %v446, 0.0
    %450 = vadd.xlane.f32.xlu0 %v449
    %v451 = vpop.xlane.xlu0 %450
    %v452 = vsel %vm163, %v448, 0.0
    %453 = vadd.xlane.f32.xlu0 %v452
    %v454 = vpop.xlane.xlu0 %453
    %v455 = vrcp.pop %v451
    %v456 = vrcp.pop %v454
    %v457 = vmul.f32 %v446, %v455
    %v458 = vmul.f32 %v448, %v456
    %459 = vrot.lane.b32.xlu0 %v103, 56
    %v460 = vpop.permute.xlu0 %459
    %v463 = vsel %vm163, %v457, 0
    %465 = vmatpush.msra.mxu0 0.0
    %466 = vmatpush.msra.mxu0 0.0
    %467 = vmatpush.msra.mxu0 0.0
    %468 = vmatpush.msra.mxu0 0.0
    %469 = vmatpush.msra.mxu0 0.0
    %470 = vmatpush.msra.mxu0 0.0
    %471 = vmatpush.msra.mxu0 0.0
    %472 = vmatpush.msra.mxu0 0.0
    %473 = vmatpush.msra.mxu0 0.0
    %474 = vmatpush.msra.mxu0 0.0
    %475 = vmatpush.msra.mxu0 0.0
    %476 = vmatpush.msra.mxu0 0.0
    %477 = vmatpush.msra.mxu0 0.0
    %478 = vmatpush.msra.mxu0 0.0
    %479 = vmatpush.msra.mxu0 0.0
    %480 = vmatpush.msra.mxu0 %v460
    %481 = vmatmul.f32.gmra.mxu0 %v463
    %v482 = vpop.f32.mrf.mxu0
    %v483 = vadd.f32 0.0, %v482
    %484 = vdwg.mxu0
    %485 = vrot.lane.b32.xlu0 %v106, 56
    %v486 = vpop.permute.xlu0 %485
    %v489 = vsel %vm163, %v458, 0
    %491 = vmatpush.msra.mxu0 0.0
    %492 = vmatpush.msra.mxu0 0.0
    %493 = vmatpush.msra.mxu0 0.0
    %494 = vmatpush.msra.mxu0 0.0
    %495 = vmatpush.msra.mxu0 0.0
    %496 = vmatpush.msra.mxu0 0.0
    %497 = vmatpush.msra.mxu0 0.0
    %498 = vmatpush.msra.mxu0 0.0
    %499 = vmatpush.msra.mxu0 0.0
    %500 = vmatpush.msra.mxu0 0.0
    %501 = vmatpush.msra.mxu0 0.0
    %502 = vmatpush.msra.mxu0 0.0
    %503 = vmatpush.msra.mxu0 0.0
    %504 = vmatpush.msra.mxu0 0.0
    %505 = vmatpush.msra.mxu0 0.0
    %506 = vmatpush.msra.mxu0 %v486
    %507 = vmatmul.f32.gmra.mxu0 %v489
    %v508 = vpop.f32.mrf.mxu0
    %v509 = vadd.f32 0.0, %v508
    %510 = vdwg.mxu0
    %513 = vrot.lane.b32.xlu0 %v483, 8
    %v514 = vpop.permute.xlu0 %513
    %515 = vrot.lane.b32.xlu0 %v509, 8
    %v516 = vpop.permute.xlu0 %515
    %vm519 = vcmask 97344
    %520 = vst.msk [vmem:[#allocation2] sm:$0xff] %vm519, %v514
    %521 = vst.msk [vmem:[#allocation2 + $0x8] sm:$0xff] %vm519, %v516
    %522 = vrot.lane.b32.xlu0 %v103, 116
    %v523 = vpop.permute.xlu0 %522
    %524 = vrot.lane.b32.xlu0 %v103, 84
    %v525 = vpop.permute.xlu0 %524
    %v526 = vsel %vm111, %v523, 0
    %v528 = vsel %vm111, %v525, 0
    %530 = vmatpush.xpose.msra.mxu0 0.0
    %531 = vmatpush.xpose.msra.mxu0 0.0
    %532 = vmatpush.xpose.msra.mxu0 0.0
    %533 = vmatpush.xpose.msra.mxu0 0.0
    %534 = vmatpush.xpose.msra.mxu0 0.0
    %535 = vmatpush.xpose.msra.mxu0 0.0
    %536 = vmatpush.xpose.msra.mxu0 0.0
    %537 = vmatpush.xpose.msra.mxu0 0.0
    %538 = vmatpush.xpose.msra.mxu0 0.0
    %539 = vmatpush.xpose.msra.mxu0 0.0
    %540 = vmatpush.xpose.msra.mxu0 0.0
    %541 = vmatpush.xpose.msra.mxu0 0.0
    %542 = vmatpush.xpose.msra.mxu0 0.0
    %543 = vmatpush.xpose.msra.mxu0 0.0
    %544 = vmatpush.xpose.msra.mxu0 0.0
    %545 = vmatpush.xpose.msra.mxu0 %v528
    %546 = vmatmul.f32.gmra.mxu0 %v526
    %v547 = vpop.f32.mrf.mxu0
    %v548 = vadd.f32 0.0, %v547
    %549 = vdwg.mxu0
    %550 = vrot.lane.b32.xlu0 %v106, 116
    %v551 = vpop.permute.xlu0 %550
    %552 = vrot.lane.b32.xlu0 %v106, 84
    %v553 = vpop.permute.xlu0 %552
    %v554 = vsel %vm111, %v551, 0
    %v556 = vsel %vm111, %v553, 0
    %558 = vmatpush.xpose.msra.mxu0 0.0
    %559 = vmatpush.xpose.msra.mxu0 0.0
    %560 = vmatpush.xpose.msra.mxu0 0.0
    %561 = vmatpush.xpose.msra.mxu0 0.0
    %562 = vmatpush.xpose.msra.mxu0 0.0
    %563 = vmatpush.xpose.msra.mxu0 0.0
    %564 = vmatpush.xpose.msra.mxu0 0.0
    %565 = vmatpush.xpose.msra.mxu0 0.0
    %566 = vmatpush.xpose.msra.mxu0 0.0
    %567 = vmatpush.xpose.msra.mxu0 0.0
    %568 = vmatpush.xpose.msra.mxu0 0.0
    %569 = vmatpush.xpose.msra.mxu0 0.0
    %570 = vmatpush.xpose.msra.mxu0 0.0
    %571 = vmatpush.xpose.msra.mxu0 0.0
    %572 = vmatpush.xpose.msra.mxu0 0.0
    %573 = vmatpush.xpose.msra.mxu0 %v556
    %574 = vmatmul.f32.gmra.mxu0 %v554
    %v575 = vpop.f32.mrf.mxu0
    %v576 = vadd.f32 0.0, %v575
    %577 = vdwg.mxu0
    %v578 = vsel %vm163, %v548, -inf
    %579 = vmax.xlane.f32.xlu0 %v578
    %v580 = vpop.xlane.xlu0 %579
    %v581 = vsel %vm163, %v576, -inf
    %582 = vmax.xlane.f32.xlu0 %v581
    %v583 = vpop.xlane.xlu0 %582
    %v584 = vsub.f32 %v548, %v580
    %v585 = vsub.f32 %v576, %v583
    %v586 = vmul.f32 %v584, 1.442695
    %v587 = vpow.pop %v586
    %v588 = vmul.f32 %v585, 1.442695
    %v589 = vpow.pop %v588
    %v590 = vsel %vm163, %v587, 0.0
    %591 = vadd.xlane.f32.xlu0 %v590
    %v592 = vpop.xlane.xlu0 %591
    %v593 = vsel %vm163, %v589, 0.0
    %594 = vadd.xlane.f32.xlu0 %v593
    %v595 = vpop.xlane.xlu0 %594
    %v596 = vrcp.pop %v592
    %v597 = vrcp.pop %v595
    %v598 = vmul.f32 %v587, %v596
    %v599 = vmul.f32 %v589, %v597
    %600 = vrot.lane.b32.xlu0 %v103, 52
    %v601 = vpop.permute.xlu0 %600
    %v604 = vsel %vm163, %v598, 0
    %606 = vmatpush.msra.mxu0 0.0
    %607 = vmatpush.msra.mxu0 0.0
    %608 = vmatpush.msra.mxu0 0.0
    %609 = vmatpush.msra.mxu0 0.0
    %610 = vmatpush.msra.mxu0 0.0
    %611 = vmatpush.msra.mxu0 0.0
    %612 = vmatpush.msra.mxu0 0.0
    %613 = vmatpush.msra.mxu0 0.0
    %614 = vmatpush.msra.mxu0 0.0
    %615 = vmatpush.msra.mxu0 0.0
    %616 = vmatpush.msra.mxu0 0.0
    %617 = vmatpush.msra.mxu0 0.0
    %618 = vmatpush.msra.mxu0 0.0
    %619 = vmatpush.msra.mxu0 0.0
    %620 = vmatpush.msra.mxu0 0.0
    %621 = vmatpush.msra.mxu0 %v601
    %622 = vmatmul.f32.gmra.mxu0 %v604
    %v623 = vpop.f32.mrf.mxu0
    %v624 = vadd.f32 0.0, %v623
    %625 = vdwg.mxu0
    %626 = vrot.lane.b32.xlu0 %v106, 52
    %v627 = vpop.permute.xlu0 %626
    %v630 = vsel %vm163, %v599, 0
    %632 = vmatpush.msra.mxu0 0.0
    %633 = vmatpush.msra.mxu0 0.0
    %634 = vmatpush.msra.mxu0 0.0
    %635 = vmatpush.msra.mxu0 0.0
    %636 = vmatpush.msra.mxu0 0.0
    %637 = vmatpush.msra.mxu0 0.0
    %638 = vmatpush.msra.mxu0 0.0
    %639 = vmatpush.msra.mxu0 0.0
    %640 = vmatpush.msra.mxu0 0.0
    %641 = vmatpush.msra.mxu0 0.0
    %642 = vmatpush.msra.mxu0 0.0
    %643 = vmatpush.msra.mxu0 0.0
    %644 = vmatpush.msra.mxu0 0.0
    %645 = vmatpush.msra.mxu0 0.0
    %646 = vmatpush.msra.mxu0 0.0
    %647 = vmatpush.msra.mxu0 %v627
    %648 = vmatmul.f32.gmra.mxu0 %v630
    %v649 = vpop.f32.mrf.mxu0
    %v650 = vadd.f32 0.0, %v649
    %651 = vdwg.mxu0
    %654 = vrot.lane.b32.xlu0 %v624, 12
    %v655 = vpop.permute.xlu0 %654
    %656 = vrot.lane.b32.xlu0 %v650, 12
    %v657 = vpop.permute.xlu0 %656
    %vm660 = vcmask 130144
    %661 = vst.msk [vmem:[#allocation2] sm:$0xff] %vm660, %v655
    %662 = vst.msk [vmem:[#allocation2 + $0x8] sm:$0xff] %vm660, %v657
    %663 = vrot.lane.b32.xlu0 %v103, 112
    %v664 = vpop.permute.xlu0 %663
    %665 = vrot.lane.b32.xlu0 %v103, 80
    %v666 = vpop.permute.xlu0 %665
    %v667 = vsel %vm111, %v664, 0
    %v669 = vsel %vm111, %v666, 0
    %671 = vmatpush.xpose.msra.mxu0 0.0
    %672 = vmatpush.xpose.msra.mxu0 0.0
    %673 = vmatpush.xpose.msra.mxu0 0.0
    %674 = vmatpush.xpose.msra.mxu0 0.0
    %675 = vmatpush.xpose.msra.mxu0 0.0
    %676 = vmatpush.xpose.msra.mxu0 0.0
    %677 = vmatpush.xpose.msra.mxu0 0.0
    %678 = vmatpush.xpose.msra.mxu0 0.0
    %679 = vmatpush.xpose.msra.mxu0 0.0
    %680 = vmatpush.xpose.msra.mxu0 0.0
    %681 = vmatpush.xpose.msra.mxu0 0.0
    %682 = vmatpush.xpose.msra.mxu0 0.0
    %683 = vmatpush.xpose.msra.mxu0 0.0
    %684 = vmatpush.xpose.msra.mxu0 0.0
    %685 = vmatpush.xpose.msra.mxu0 0.0
    %686 = vmatpush.xpose.msra.mxu0 %v669
    %687 = vmatmul.f32.gmra.mxu0 %v667
    %v688 = vpop.f32.mrf.mxu0
    %v689 = vadd.f32 0.0, %v688
    %690 = vdwg.mxu0
    %691 = vrot.lane.b32.xlu0 %v106, 112
    %v692 = vpop.permute.xlu0 %691
    %693 = vrot.lane.b32.xlu0 %v106, 80
    %v694 = vpop.permute.xlu0 %693
    %v695 = vsel %vm111, %v692, 0
    %v697 = vsel %vm111, %v694, 0
    %699 = vmatpush.xpose.msra.mxu0 0.0
    %700 = vmatpush.xpose.msra.mxu0 0.0
    %701 = vmatpush.xpose.msra.mxu0 0.0
    %702 = vmatpush.xpose.msra.mxu0 0.0
    %703 = vmatpush.xpose.msra.mxu0 0.0
    %704 = vmatpush.xpose.msra.mxu0 0.0
    %705 = vmatpush.xpose.msra.mxu0 0.0
    %706 = vmatpush.xpose.msra.mxu0 0.0
    %707 = vmatpush.xpose.msra.mxu0 0.0
    %708 = vmatpush.xpose.msra.mxu0 0.0
    %709 = vmatpush.xpose.msra.mxu0 0.0
    %710 = vmatpush.xpose.msra.mxu0 0.0
    %711 = vmatpush.xpose.msra.mxu0 0.0
    %712 = vmatpush.xpose.msra.mxu0 0.0
    %713 = vmatpush.xpose.msra.mxu0 0.0
    %714 = vmatpush.xpose.msra.mxu0 %v697
    %715 = vmatmul.f32.gmra.mxu0 %v695
    %v716 = vpop.f32.mrf.mxu0
    %v717 = vadd.f32 0.0, %v716
    %718 = vdwg.mxu0
    %v719 = vsel %vm163, %v689, -inf
    %720 = vmax.xlane.f32.xlu0 %v719
    %v721 = vpop.xlane.xlu0 %720
    %v722 = vsel %vm163, %v717, -inf
    %723 = vmax.xlane.f32.xlu0 %v722
    %v724 = vpop.xlane.xlu0 %723
    %v725 = vsub.f32 %v689, %v721
    %v726 = vsub.f32 %v717, %v724
    %v727 = vmul.f32 %v725, 1.442695
    %v728 = vpow.pop %v727
    %v729 = vmul.f32 %v726, 1.442695
    %v730 = vpow.pop %v729
    %v731 = vsel %vm163, %v728, 0.0
    %732 = vadd.xlane.f32.xlu0 %v731
    %v733 = vpop.xlane.xlu0 %732
    %v734 = vsel %vm163, %v730, 0.0
    %735 = vadd.xlane.f32.xlu0 %v734
    %v736 = vpop.xlane.xlu0 %735
    %v737 = vrcp.pop %v733
    %v738 = vrcp.pop %v736
    %v739 = vmul.f32 %v728, %v737
    %v740 = vmul.f32 %v730, %v738
    %741 = vrot.lane.b32.xlu0 %v103, 48
    %v742 = vpop.permute.xlu0 %741
    %v745 = vsel %vm163, %v739, 0
    %747 = vmatpush.msra.mxu0 0.0
    %748 = vmatpush.msra.mxu0 0.0
    %749 = vmatpush.msra.mxu0 0.0
    %750 = vmatpush.msra.mxu0 0.0
    %751 = vmatpush.msra.mxu0 0.0
    %752 = vmatpush.msra.mxu0 0.0
    %753 = vmatpush.msra.mxu0 0.0
    %754 = vmatpush.msra.mxu0 0.0
    %755 = vmatpush.msra.mxu0 0.0
    %756 = vmatpush.msra.mxu0 0.0
    %757 = vmatpush.msra.mxu0 0.0
    %758 = vmatpush.msra.mxu0 0.0
    %759 = vmatpush.msra.mxu0 0.0
    %760 = vmatpush.msra.mxu0 0.0
    %761 = vmatpush.msra.mxu0 0.0
    %762 = vmatpush.msra.mxu0 %v742
    %763 = vmatmul.f32.gmra.mxu0 %v745
    %v764 = vpop.f32.mrf.mxu0
    %v765 = vadd.f32 0.0, %v764
    %766 = vdwg.mxu0
    %767 = vrot.lane.b32.xlu0 %v106, 48
    %v768 = vpop.permute.xlu0 %767
    %v771 = vsel %vm163, %v740, 0
    %773 = vmatpush.msra.mxu0 0.0
    %774 = vmatpush.msra.mxu0 0.0
    %775 = vmatpush.msra.mxu0 0.0
    %776 = vmatpush.msra.mxu0 0.0
    %777 = vmatpush.msra.mxu0 0.0
    %778 = vmatpush.msra.mxu0 0.0
    %779 = vmatpush.msra.mxu0 0.0
    %780 = vmatpush.msra.mxu0 0.0
    %781 = vmatpush.msra.mxu0 0.0
    %782 = vmatpush.msra.mxu0 0.0
    %783 = vmatpush.msra.mxu0 0.0
    %784 = vmatpush.msra.mxu0 0.0
    %785 = vmatpush.msra.mxu0 0.0
    %786 = vmatpush.msra.mxu0 0.0
    %787 = vmatpush.msra.mxu0 0.0
    %788 = vmatpush.msra.mxu0 %v768
    %789 = vmatmul.f32.gmra.mxu0 %v771
    %v790 = vpop.f32.mrf.mxu0
    %v791 = vadd.f32 0.0, %v790
    %792 = vdwg.mxu0
    %795 = vrot.lane.b32.xlu0 %v765, 16
    %v796 = vpop.permute.xlu0 %795
    %797 = vrot.lane.b32.xlu0 %v791, 16
    %v798 = vpop.permute.xlu0 %797
    %vm801 = vcmask 162944
    %802 = vst.msk [vmem:[#allocation2] sm:$0xff] %vm801, %v796
    %803 = vst.msk [vmem:[#allocation2 + $0x8] sm:$0xff] %vm801, %v798
    %804 = vrot.lane.b32.xlu0 %v103, 108
    %v805 = vpop.permute.xlu0 %804
    %806 = vrot.lane.b32.xlu0 %v103, 76
    %v807 = vpop.permute.xlu0 %806
    %v808 = vsel %vm111, %v805, 0
    %v810 = vsel %vm111, %v807, 0
    %812 = vmatpush.xpose.msra.mxu0 0.0
    %813 = vmatpush.xpose.msra.mxu0 0.0
    %814 = vmatpush.xpose.msra.mxu0 0.0
    %815 = vmatpush.xpose.msra.mxu0 0.0
    %816 = vmatpush.xpose.msra.mxu0 0.0
    %817 = vmatpush.xpose.msra.mxu0 0.0
    %818 = vmatpush.xpose.msra.mxu0 0.0
    %819 = vmatpush.xpose.msra.mxu0 0.0
    %820 = vmatpush.xpose.msra.mxu0 0.0
    %821 = vmatpush.xpose.msra.mxu0 0.0
    %822 = vmatpush.xpose.msra.mxu0 0.0
    %823 = vmatpush.xpose.msra.mxu0 0.0
    %824 = vmatpush.xpose.msra.mxu0 0.0
    %825 = vmatpush.xpose.msra.mxu0 0.0
    %826 = vmatpush.xpose.msra.mxu0 0.0
    %827 = vmatpush.xpose.msra.mxu0 %v810
    %828 = vmatmul.f32.gmra.mxu0 %v808
    %v829 = vpop.f32.mrf.mxu0
    %v830 = vadd.f32 0.0, %v829
    %831 = vdwg.mxu0
    %832 = vrot.lane.b32.xlu0 %v106, 108
    %v833 = vpop.permute.xlu0 %832
    %834 = vrot.lane.b32.xlu0 %v106, 76
    %v835 = vpop.permute.xlu0 %834
    %v836 = vsel %vm111, %v833, 0
    %v838 = vsel %vm111, %v835, 0
    %840 = vmatpush.xpose.msra.mxu0 0.0
    %841 = vmatpush.xpose.msra.mxu0 0.0
    %842 = vmatpush.xpose.msra.mxu0 0.0
    %843 = vmatpush.xpose.msra.mxu0 0.0
    %844 = vmatpush.xpose.msra.mxu0 0.0
    %845 = vmatpush.xpose.msra.mxu0 0.0
    %846 = vmatpush.xpose.msra.mxu0 0.0
    %847 = vmatpush.xpose.msra.mxu0 0.0
    %848 = vmatpush.xpose.msra.mxu0 0.0
    %849 = vmatpush.xpose.msra.mxu0 0.0
    %850 = vmatpush.xpose.msra.mxu0 0.0
    %851 = vmatpush.xpose.msra.mxu0 0.0
    %852 = vmatpush.xpose.msra.mxu0 0.0
    %853 = vmatpush.xpose.msra.mxu0 0.0
    %854 = vmatpush.xpose.msra.mxu0 0.0
    %855 = vmatpush.xpose.msra.mxu0 %v838
    %856 = vmatmul.f32.gmra.mxu0 %v836
    %v857 = vpop.f32.mrf.mxu0
    %v858 = vadd.f32 0.0, %v857
    %859 = vdwg.mxu0
    %v860 = vsel %vm163, %v830, -inf
    %861 = vmax.xlane.f32.xlu0 %v860
    %v862 = vpop.xlane.xlu0 %861
    %v863 = vsel %vm163, %v858, -inf
    %864 = vmax.xlane.f32.xlu0 %v863
    %v865 = vpop.xlane.xlu0 %864
    %v866 = vsub.f32 %v830, %v862
    %v867 = vsub.f32 %v858, %v865
    %v868 = vmul.f32 %v866, 1.442695
    %v869 = vpow.pop %v868
    %v870 = vmul.f32 %v867, 1.442695
    %v871 = vpow.pop %v870
    %v872 = vsel %vm163, %v869, 0.0
    %873 = vadd.xlane.f32.xlu0 %v872
    %v874 = vpop.xlane.xlu0 %873
    %v875 = vsel %vm163, %v871, 0.0
    %876 = vadd.xlane.f32.xlu0 %v875
    %v877 = vpop.xlane.xlu0 %876
    %v878 = vrcp.pop %v874
    %v879 = vrcp.pop %v877
    %v880 = vmul.f32 %v869, %v878
    %v881 = vmul.f32 %v871, %v879
    %882 = vrot.lane.b32.xlu0 %v103, 44
    %v883 = vpop.permute.xlu0 %882
    %v886 = vsel %vm163, %v880, 0
    %888 = vmatpush.msra.mxu0 0.0
    %889 = vmatpush.msra.mxu0 0.0
    %890 = vmatpush.msra.mxu0 0.0
    %891 = vmatpush.msra.mxu0 0.0
    %892 = vmatpush.msra.mxu0 0.0
    %893 = vmatpush.msra.mxu0 0.0
    %894 = vmatpush.msra.mxu0 0.0
    %895 = vmatpush.msra.mxu0 0.0
    %896 = vmatpush.msra.mxu0 0.0
    %897 = vmatpush.msra.mxu0 0.0
    %898 = vmatpush.msra.mxu0 0.0
    %899 = vmatpush.msra.mxu0 0.0
    %900 = vmatpush.msra.mxu0 0.0
    %901 = vmatpush.msra.mxu0 0.0
    %902 = vmatpush.msra.mxu0 0.0
    %903 = vmatpush.msra.mxu0 %v883
    %904 = vmatmul.f32.gmra.mxu0 %v886
    %v905 = vpop.f32.mrf.mxu0
    %v906 = vadd.f32 0.0, %v905
    %907 = vdwg.mxu0
    %908 = vrot.lane.b32.xlu0 %v106, 44
    %v909 = vpop.permute.xlu0 %908
    %v912 = vsel %vm163, %v881, 0
    %914 = vmatpush.msra.mxu0 0.0
    %915 = vmatpush.msra.mxu0 0.0
    %916 = vmatpush.msra.mxu0 0.0
    %917 = vmatpush.msra.mxu0 0.0
    %918 = vmatpush.msra.mxu0 0.0
    %919 = vmatpush.msra.mxu0 0.0
    %920 = vmatpush.msra.mxu0 0.0
    %921 = vmatpush.msra.mxu0 0.0
    %922 = vmatpush.msra.mxu0 0.0
    %923 = vmatpush.msra.mxu0 0.0
    %924 = vmatpush.msra.mxu0 0.0
    %925 = vmatpush.msra.mxu0 0.0
    %926 = vmatpush.msra.mxu0 0.0
    %927 = vmatpush.msra.mxu0 0.0
    %928 = vmatpush.msra.mxu0 0.0
    %929 = vmatpush.msra.mxu0 %v909
    %930 = vmatmul.f32.gmra.mxu0 %v912
    %v931 = vpop.f32.mrf.mxu0
    %v932 = vadd.f32 0.0, %v931
    %933 = vdwg.mxu0
    %936 = vrot.lane.b32.xlu0 %v906, 20
    %v937 = vpop.permute.xlu0 %936
    %938 = vrot.lane.b32.xlu0 %v932, 20
    %v939 = vpop.permute.xlu0 %938
    %vm942 = vcmask 195744
    %943 = vst.msk [vmem:[#allocation2] sm:$0xff] %vm942, %v937
    %944 = vst.msk [vmem:[#allocation2 + $0x8] sm:$0xff] %vm942, %v939
    %945 = vrot.lane.b32.xlu0 %v103, 104
    %v946 = vpop.permute.xlu0 %945
    %947 = vrot.lane.b32.xlu0 %v103, 72
    %v948 = vpop.permute.xlu0 %947
    %v949 = vsel %vm111, %v946, 0
    %v951 = vsel %vm111, %v948, 0
    %953 = vmatpush.xpose.msra.mxu0 0.0
    %954 = vmatpush.xpose.msra.mxu0 0.0
    %955 = vmatpush.xpose.msra.mxu0 0.0
    %956 = vmatpush.xpose.msra.mxu0 0.0
    %957 = vmatpush.xpose.msra.mxu0 0.0
    %958 = vmatpush.xpose.msra.mxu0 0.0
    %959 = vmatpush.xpose.msra.mxu0 0.0
    %960 = vmatpush.xpose.msra.mxu0 0.0
    %961 = vmatpush.xpose.msra.mxu0 0.0
    %962 = vmatpush.xpose.msra.mxu0 0.0
    %963 = vmatpush.xpose.msra.mxu0 0.0
    %964 = vmatpush.xpose.msra.mxu0 0.0
    %965 = vmatpush.xpose.msra.mxu0 0.0
    %966 = vmatpush.xpose.msra.mxu0 0.0
    %967 = vmatpush.xpose.msra.mxu0 0.0
    %968 = vmatpush.xpose.msra.mxu0 %v951
    %969 = vmatmul.f32.gmra.mxu0 %v949
    %v970 = vpop.f32.mrf.mxu0
    %v971 = vadd.f32 0.0, %v970
    %972 = vdwg.mxu0
    %973 = vrot.lane.b32.xlu0 %v106, 104
    %v974 = vpop.permute.xlu0 %973
    %975 = vrot.lane.b32.xlu0 %v106, 72
    %v976 = vpop.permute.xlu0 %975
    %v977 = vsel %vm111, %v974, 0
    %v979 = vsel %vm111, %v976, 0
    %981 = vmatpush.xpose.msra.mxu0 0.0
    %982 = vmatpush.xpose.msra.mxu0 0.0
    %983 = vmatpush.xpose.msra.mxu0 0.0
    %984 = vmatpush.xpose.msra.mxu0 0.0
    %985 = vmatpush.xpose.msra.mxu0 0.0
    %986 = vmatpush.xpose.msra.mxu0 0.0
    %987 = vmatpush.xpose.msra.mxu0 0.0
    %988 = vmatpush.xpose.msra.mxu0 0.0
    %989 = vmatpush.xpose.msra.mxu0 0.0
    %990 = vmatpush.xpose.msra.mxu0 0.0
    %991 = vmatpush.xpose.msra.mxu0 0.0
    %992 = vmatpush.xpose.msra.mxu0 0.0
    %993 = vmatpush.xpose.msra.mxu0 0.0
    %994 = vmatpush.xpose.msra.mxu0 0.0
    %995 = vmatpush.xpose.msra.mxu0 0.0
    %996 = vmatpush.xpose.msra.mxu0 %v979
    %997 = vmatmul.f32.gmra.mxu0 %v977
    %v998 = vpop.f32.mrf.mxu0
    %v999 = vadd.f32 0.0, %v998
    %1000 = vdwg.mxu0
    %v1001 = vsel %vm163, %v971, -inf
    %1002 = vmax.xlane.f32.xlu0 %v1001
    %v1003 = vpop.xlane.xlu0 %1002
    %v1004 = vsel %vm163, %v999, -inf
    %1005 = vmax.xlane.f32.xlu0 %v1004
    %v1006 = vpop.xlane.xlu0 %1005
    %v1007 = vsub.f32 %v971, %v1003
    %v1008 = vsub.f32 %v999, %v1006
    %v1009 = vmul.f32 %v1007, 1.442695
    %v1010 = vpow.pop %v1009
    %v1011 = vmul.f32 %v1008, 1.442695
    %v1012 = vpow.pop %v1011
    %v1013 = vsel %vm163, %v1010, 0.0
    %1014 = vadd.xlane.f32.xlu0 %v1013
    %v1015 = vpop.xlane.xlu0 %1014
    %v1016 = vsel %vm163, %v1012, 0.0
    %1017 = vadd.xlane.f32.xlu0 %v1016
    %v1018 = vpop.xlane.xlu0 %1017
    %v1019 = vrcp.pop %v1015
    %v1020 = vrcp.pop %v1018
    %v1021 = vmul.f32 %v1010, %v1019
    %v1022 = vmul.f32 %v1012, %v1020
    %1023 = vrot.lane.b32.xlu0 %v103, 40
    %v1024 = vpop.permute.xlu0 %1023
    %v1027 = vsel %vm163, %v1021, 0
    %1029 = vmatpush.msra.mxu0 0.0
    %1030 = vmatpush.msra.mxu0 0.0
    %1031 = vmatpush.msra.mxu0 0.0
    %1032 = vmatpush.msra.mxu0 0.0
    %1033 = vmatpush.msra.mxu0 0.0
    %1034 = vmatpush.msra.mxu0 0.0
    %1035 = vmatpush.msra.mxu0 0.0
    %1036 = vmatpush.msra.mxu0 0.0
    %1037 = vmatpush.msra.mxu0 0.0
    %1038 = vmatpush.msra.mxu0 0.0
    %1039 = vmatpush.msra.mxu0 0.0
    %1040 = vmatpush.msra.mxu0 0.0
    %1041 = vmatpush.msra.mxu0 0.0
    %1042 = vmatpush.msra.mxu0 0.0
    %1043 = vmatpush.msra.mxu0 0.0
    %1044 = vmatpush.msra.mxu0 %v1024
    %1045 = vmatmul.f32.gmra.mxu0 %v1027
    %v1046 = vpop.f32.mrf.mxu0
    %v1047 = vadd.f32 0.0, %v1046
    %1048 = vdwg.mxu0
    %1049 = vrot.lane.b32.xlu0 %v106, 40
    %v1050 = vpop.permute.xlu0 %1049
    %v1053 = vsel %vm163, %v1022, 0
    %1055 = vmatpush.msra.mxu0 0.0
    %1056 = vmatpush.msra.mxu0 0.0
    %1057 = vmatpush.msra.mxu0 0.0
    %1058 = vmatpush.msra.mxu0 0.0
    %1059 = vmatpush.msra.mxu0 0.0
    %1060 = vmatpush.msra.mxu0 0.0
    %1061 = vmatpush.msra.mxu0 0.0
    %1062 = vmatpush.msra.mxu0 0.0
    %1063 = vmatpush.msra.mxu0 0.0
    %1064 = vmatpush.msra.mxu0 0.0
    %1065 = vmatpush.msra.mxu0 0.0
    %1066 = vmatpush.msra.mxu0 0.0
    %1067 = vmatpush.msra.mxu0 0.0
    %1068 = vmatpush.msra.mxu0 0.0
    %1069 = vmatpush.msra.mxu0 0.0
    %1070 = vmatpush.msra.mxu0 %v1050
    %1071 = vmatmul.f32.gmra.mxu0 %v1053
    %v1072 = vpop.f32.mrf.mxu0
    %v1073 = vadd.f32 0.0, %v1072
    %1074 = vdwg.mxu0
    %1077 = vrot.lane.b32.xlu0 %v1047, 24
    %v1078 = vpop.permute.xlu0 %1077
    %1079 = vrot.lane.b32.xlu0 %v1073, 24
    %v1080 = vpop.permute.xlu0 %1079
    %vm1083 = vcmask 228544
    %1084 = vst.msk [vmem:[#allocation2] sm:$0xff] %vm1083, %v1078
    %1085 = vst.msk [vmem:[#allocation2 + $0x8] sm:$0xff] %vm1083, %v1080
    %1086 = vrot.lane.b32.xlu0 %v103, 100
    %v1087 = vpop.permute.xlu0 %1086
    %1088 = vrot.lane.b32.xlu0 %v103, 68
    %v1089 = vpop.permute.xlu0 %1088
    %v1090 = vsel %vm111, %v1087, 0
    %v1092 = vsel %vm111, %v1089, 0
    %1094 = vmatpush.xpose.msra.mxu0 0.0
    %1095 = vmatpush.xpose.msra.mxu0 0.0
    %1096 = vmatpush.xpose.msra.mxu0 0.0
    %1097 = vmatpush.xpose.msra.mxu0 0.0
    %1098 = vmatpush.xpose.msra.mxu0 0.0
    %1099 = vmatpush.xpose.msra.mxu0 0.0
    %1100 = vmatpush.xpose.msra.mxu0 0.0
    %1101 = vmatpush.xpose.msra.mxu0 0.0
    %1102 = vmatpush.xpose.msra.mxu0 0.0
    %1103 = vmatpush.xpose.msra.mxu0 0.0
    %1104 = vmatpush.xpose.msra.mxu0 0.0
    %1105 = vmatpush.xpose.msra.mxu0 0.0
    %1106 = vmatpush.xpose.msra.mxu0 0.0
    %1107 = vmatpush.xpose.msra.mxu0 0.0
    %1108 = vmatpush.xpose.msra.mxu0 0.0
    %1109 = vmatpush.xpose.msra.mxu0 %v1092
    %1110 = vmatmul.f32.gmra.mxu0 %v1090
    %v1111 = vpop.f32.mrf.mxu0
    %v1112 = vadd.f32 0.0, %v1111
    %1113 = vdwg.mxu0
    %1114 = vrot.lane.b32.xlu0 %v106, 100
    %v1115 = vpop.permute.xlu0 %1114
    %1116 = vrot.lane.b32.xlu0 %v106, 68
    %v1117 = vpop.permute.xlu0 %1116
    %v1118 = vsel %vm111, %v1115, 0
    %v1120 = vsel %vm111, %v1117, 0
    %1122 = vmatpush.xpose.msra.mxu0 0.0
    %1123 = vmatpush.xpose.msra.mxu0 0.0
    %1124 = vmatpush.xpose.msra.mxu0 0.0
    %1125 = vmatpush.xpose.msra.mxu0 0.0
    %1126 = vmatpush.xpose.msra.mxu0 0.0
    %1127 = vmatpush.xpose.msra.mxu0 0.0
    %1128 = vmatpush.xpose.msra.mxu0 0.0
    %1129 = vmatpush.xpose.msra.mxu0 0.0
    %1130 = vmatpush.xpose.msra.mxu0 0.0
    %1131 = vmatpush.xpose.msra.mxu0 0.0
    %1132 = vmatpush.xpose.msra.mxu0 0.0
    %1133 = vmatpush.xpose.msra.mxu0 0.0
    %1134 = vmatpush.xpose.msra.mxu0 0.0
    %1135 = vmatpush.xpose.msra.mxu0 0.0
    %1136 = vmatpush.xpose.msra.mxu0 0.0
    %1137 = vmatpush.xpose.msra.mxu0 %v1120
    %1138 = vmatmul.f32.gmra.mxu0 %v1118
    %v1139 = vpop.f32.mrf.mxu0
    %v1140 = vadd.f32 0.0, %v1139
    %1141 = vdwg.mxu0
    %v1142 = vsel %vm163, %v1112, -inf
    %1143 = vmax.xlane.f32.xlu0 %v1142
    %v1144 = vpop.xlane.xlu0 %1143
    %v1145 = vsel %vm163, %v1140, -inf
    %1146 = vmax.xlane.f32.xlu0 %v1145
    %v1147 = vpop.xlane.xlu0 %1146
    %v1148 = vsub.f32 %v1112, %v1144
    %v1149 = vsub.f32 %v1140, %v1147
    %v1150 = vmul.f32 %v1148, 1.442695
    %v1151 = vpow.pop %v1150
    %v1152 = vmul.f32 %v1149, 1.442695
    %v1153 = vpow.pop %v1152
    %v1154 = vsel %vm163, %v1151, 0.0
    %1155 = vadd.xlane.f32.xlu0 %v1154
    %v1156 = vpop.xlane.xlu0 %1155
    %v1157 = vsel %vm163, %v1153, 0.0
    %1158 = vadd.xlane.f32.xlu0 %v1157
    %v1159 = vpop.xlane.xlu0 %1158
    %v1160 = vrcp.pop %v1156
    %v1161 = vrcp.pop %v1159
    %v1162 = vmul.f32 %v1151, %v1160
    %v1163 = vmul.f32 %v1153, %v1161
    %1164 = vrot.lane.b32.xlu0 %v103, 36
    %v1165 = vpop.permute.xlu0 %1164
    %v1168 = vsel %vm163, %v1162, 0
    %1170 = vmatpush.msra.mxu0 0.0
    %1171 = vmatpush.msra.mxu0 0.0
    %1172 = vmatpush.msra.mxu0 0.0
    %1173 = vmatpush.msra.mxu0 0.0
    %1174 = vmatpush.msra.mxu0 0.0
    %1175 = vmatpush.msra.mxu0 0.0
    %1176 = vmatpush.msra.mxu0 0.0
    %1177 = vmatpush.msra.mxu0 0.0
    %1178 = vmatpush.msra.mxu0 0.0
    %1179 = vmatpush.msra.mxu0 0.0
    %1180 = vmatpush.msra.mxu0 0.0
    %1181 = vmatpush.msra.mxu0 0.0
    %1182 = vmatpush.msra.mxu0 0.0
    %1183 = vmatpush.msra.mxu0 0.0
    %1184 = vmatpush.msra.mxu0 0.0
    %1185 = vmatpush.msra.mxu0 %v1165
    %1186 = vmatmul.f32.gmra.mxu0 %v1168
    %v1187 = vpop.f32.mrf.mxu0
    %v1188 = vadd.f32 0.0, %v1187
    %1189 = vdwg.mxu0
    %1190 = vrot.lane.b32.xlu0 %v106, 36
    %v1191 = vpop.permute.xlu0 %1190
    %v1194 = vsel %vm163, %v1163, 0
    %1196 = vmatpush.msra.mxu0 0.0
    %1197 = vmatpush.msra.mxu0 0.0
    %1198 = vmatpush.msra.mxu0 0.0
    %1199 = vmatpush.msra.mxu0 0.0
    %1200 = vmatpush.msra.mxu0 0.0
    %1201 = vmatpush.msra.mxu0 0.0
    %1202 = vmatpush.msra.mxu0 0.0
    %1203 = vmatpush.msra.mxu0 0.0
    %1204 = vmatpush.msra.mxu0 0.0
    %1205 = vmatpush.msra.mxu0 0.0
    %1206 = vmatpush.msra.mxu0 0.0
    %1207 = vmatpush.msra.mxu0 0.0
    %1208 = vmatpush.msra.mxu0 0.0
    %1209 = vmatpush.msra.mxu0 0.0
    %1210 = vmatpush.msra.mxu0 0.0
    %1211 = vmatpush.msra.mxu0 %v1191
    %1212 = vmatmul.f32.gmra.mxu0 %v1194
    %v1213 = vpop.f32.mrf.mxu0
    %v1214 = vadd.f32 0.0, %v1213
    %1215 = vdwg.mxu0
    %1218 = vrot.lane.b32.xlu0 %v1188, 28
    %v1219 = vpop.permute.xlu0 %1218
    %1220 = vrot.lane.b32.xlu0 %v1214, 28
    %v1221 = vpop.permute.xlu0 %1220
    %vm1224 = vcmask 261344
    %1225 = vst.msk [vmem:[#allocation2] sm:$0xff] %vm1224, %v1219
    %1226 = vst.msk [vmem:[#allocation2 + $0x8] sm:$0xff] %vm1224, %v1221
    %v1227 = vld [vmem:[#allocation2] sm:$0xff]
    %s1228 = scalar_lea.vmem [#allocation2], 8
    %v1229 = vld [vmem:[%s1228] sm:$0xff]
    %v1230 = vld [vmem:[#allocation8] sm:$0xff]
    %v1231 = vld [vmem:[#allocation8 + $0x8] sm:$0xff]
    %v1232 = vld [vmem:[#allocation8 + $0x10] sm:$0xff]
    %v1233 = vld [vmem:[#allocation8 + $0x18] sm:$0xff]
    %v1234 = vld [vmem:[%s4] sm:$0x1]
    %v1236 = vperm.slane %v1234, 0
    %v1239 = vsel %vm78, %v1227, 0
    %v1242 = vsel %vm78, %v1229, 0
    %1244 = vmatpush.msra.mxu0 0.0
    %1245 = vmatpush.msra.mxu0 0.0
    %1246 = vmatpush.msra.mxu0 0.0
    %1247 = vmatpush.msra.mxu0 0.0
    %1248 = vmatpush.msra.mxu0 0.0
    %1249 = vmatpush.msra.mxu0 0.0
    %1250 = vmatpush.msra.mxu0 0.0
    %1251 = vmatpush.msra.mxu0 0.0
    %1252 = vmatpush.msra.mxu0 0.0
    %1253 = vmatpush.msra.mxu0 0.0
    %1254 = vmatpush.msra.mxu0 0.0
    %1255 = vmatpush.msra.mxu0 0.0
    %1256 = vmatpush.msra.mxu0 %v1233
    %1257 = vmatpush.msra.mxu0 %v1232
    %1258 = vmatpush.msra.mxu0 %v1231
    %1259 = vmatpush.msra.mxu0 %v1230
    %1260 = vmatmul.f32.gmra.mxu0 %v1239
    %v1261 = vpop.f32.mrf.mxu0
    %v1262 = vadd.f32 %v1236, %v1261
    %1263 = vmatmul.f32.gmra.mxu0 %v1242
    %v1264 = vpop.f32.mrf.mxu0
    %v1265 = vadd.f32 %v1236, %v1264
    %1266 = vdwg.mxu0
    %1267 = vst.msk [vmem:[#allocation9] sm:$0xff] %vm78, %v1262
    %1268 = vst.msk [vmem:[#allocation9 + $0x8] sm:$0xff] %vm78, %v1265
    // Predicated region
    $region34: #{fractal_attention.1} parent=1 // pred_check
      _
    $region35: #{fractal_attention.1} parent=1 // pred_check_branch
      %1270 = sbr.rel (0) target = $region37
    $region36: #{fractal_attention.1} parent=1 // pred_region
      %1272 = vsyncadd [#allocation5], 0
      %s1273 = sshll.u32 [#allocation9], 4
      %s1274 = int_to_ptr.vmem [resolvable:$true] %s1273
      %s1275 = sshll.u32 %s5, 4
      %s1276 = int_to_ptr.hbm [resolvable:$true] %s1275
      %1281 = dma.vmem_to_hbm [thread:$0]  %s1274, 256, %s1276, [#allocation5], 128, 128, 8
    $region37: #{fractal_attention.1} parent=1 // pred_fallthru
      _
    // Predicated region
    $region38: #{fractal_attention.1} parent=1 // pred_check
      _
    $region39: #{fractal_attention.1} parent=1 // pred_check_branch
      %1283 = sbr.rel (0) target = $region41
    $region40: #{fractal_attention.1} parent=1 // pred_region
      %1285 = dma.done [#allocation5], 256
    $region41: #{fractal_attention.1} parent=1 // pred_fallthru
      _
    %1286 = vsyncpa [#allocation4], 1
    %1287 = vsyncpa [#allocation7], 1
    %1288 = vsyncpa [#allocation5], 1

</llo_original>
